<compile_context>
chip_gen: v7x
topology: tpu7x:2x2x1
jax: 0.10.0
libtpu: 0.0.40
codegen_flags: <defaults>
</compile_context>

<pallas_src>
import functools

import jax
import jax.numpy as jnp
from jax.experimental import pallas as pl
from jax.experimental.pallas import tpu as pltpu


_VMEM = pl.BlockSpec(memory_space=pltpu.MemorySpace.VMEM)
_OUT_PAD = 128          # lane-dense classifier output width (real width = 2)
_NUM_CLASSES = 2
_VMEM_LIMIT_BYTES = 64 * 1024 * 1024   # safe on v5e/v6e (128 MiB) and v7x (64 MiB)


# ---------------------------------------------------------------------------
# Fused kernel: degree scaling + weight evolution + GCN + classifier
# ---------------------------------------------------------------------------
def _make_fused_kernel(num_layers):
    def kernel(adj_ref, x_ref, *refs):
        layer_refs = refs[: 4 * num_layers]
        w1_ref, b1_ref, w2_ref, b2_ref, out_ref = refs[4 * num_layers:]
        dot = functools.partial(jnp.dot, preferred_element_type=jnp.float32)
        bf16 = jnp.bfloat16

        # ---- symmetric normalization, A_hat never materialized --------------
        # deg(A+I) = rowsum(A) + 1  (so deg >= 1, no epsilon needed)
        a = adj_ref[...]                                      # f32 [N, N]
        r_fac = jax.lax.rsqrt(jnp.sum(a, axis=-1, keepdims=True) + 1.0)  # [N,1]
        a_bf = a.astype(bf16)                                 # cast once, reuse

        h = x_ref[...].astype(jnp.float32)                    # [N, d0]
        for l in range(num_layers):
            wu_ref, uh_ref, b_ref, w_ref = layer_refs[4 * l: 4 * l + 4]

            # ---- GRU weight evolution (interleaved, one merged gate matmul) -
            w = w_ref[...]                                    # f32 [d_in, d_out]
            d = w.shape[0]
            w_bf = w.astype(bf16)
            p = dot(wu_ref[...], w_bf)                        # [5d, d_out] f32
            b = b_ref[...]                                    # [3d, d_out] f32
            z = jax.nn.sigmoid(p[0:d] + p[3 * d:4 * d] + b[0:d])
            r = jax.nn.sigmoid(p[d:2 * d] + p[4 * d:5 * d] + b[d:2 * d])
            hc = jnp.tanh(p[2 * d:3 * d]
                          + dot(uh_ref[...], (r * w).astype(bf16))
                          + b[2 * d:3 * d])
            w_evolved = ((1.0 - z) * w + z * hc).astype(bf16)  # [d_in, d_out]

            # ---- GCN propagation: ReLU( A_hat @ h @ W' ), A_hat folded ------
            hs = r_fac * h                                    # D^-1/2 h
            t = dot(a_bf, hs.astype(bf16)) + hs               # (A + I) D^-1/2 h
            t = r_fac * t                                     # D^-1/2 (A+I) D^-1/2 h
            h = jnp.maximum(dot(t.astype(bf16), w_evolved), 0.0)

        # ---- classifier head (Dropout is identity in eval mode) -------------
        h1 = jnp.maximum(dot(h.astype(bf16), w1_ref[...]) + b1_ref[...], 0.0)
        logits = dot(h1.astype(bf16), w2_ref[...]) + b2_ref[...]  # [N, 128]
        out_ref[...] = logits.astype(out_ref.dtype)

    return kernel


# ---------------------------------------------------------------------------
# Forward pass: single jitted pallas_call
# ---------------------------------------------------------------------------
@jax.jit
def evolvegcn_classifier_forward(params, x, adj):
    num_layers = len(params["layers"])
    n = x.shape[0]

    args = [adj, x]
    for lp in params["layers"]:
        args += [lp["WU"], lp["Uh"], lp["b_zrh"], lp["W"]]
    c = params["cls"]
    args += [c["W1"], c["b1"], c["W2_pad"], c["b2_pad"]]

    out_padded = pl.pallas_call(
        _make_fused_kernel(num_layers),
        in_specs=[_VMEM] * len(args),
        out_specs=_VMEM,
        out_shape=jax.ShapeDtypeStruct((n, _OUT_PAD), jnp.float32),
        compiler_params=pltpu.CompilerParams(
            vmem_limit_bytes=_VMEM_LIMIT_BYTES),
    )(*args)
    return out_padded[:, :_NUM_CLASSES]


# ---------------------------------------------------------------------------
# Parameter construction (deterministic, synthetic).
#   - GRU gate weights stacked as [Wz;Wr;Wh;Uz;Ur] -> (5d, d), stored bf16.
#   - Gate biases pre-broadcast to (3d, d_out), f32.
#   - Classifier weights bf16; final projection padded to 128 lanes.
# ---------------------------------------------------------------------------
def init_params(key, in_channels, hidden_channels, num_layers):
    params = {"layers": []}
    dims = [in_channels] + [hidden_channels] * num_layers
    for layer in range(num_layers):
        d_in, d_out = dims[layer], dims[layer + 1]
        key, *ks = jax.random.split(key, 8)
        scale = 1.0 / jnp.sqrt(jnp.float32(d_in))
        wz = jax.random.normal(ks[1], (d_in, d_in), jnp.float32) * 0.1
        wr = jax.random.normal(ks[2], (d_in, d_in), jnp.float32) * 0.1
        wh = jax.random.normal(ks[3], (d_in, d_in), jnp.float32) * 0.1
        uz = jax.random.normal(ks[4], (d_in, d_in), jnp.float32) * 0.1
        ur = jax.random.normal(ks[5], (d_in, d_in), jnp.float32) * 0.1
        uh = jax.random.normal(ks[6], (d_in, d_in), jnp.float32) * 0.1
        layer_p = {
            "W": jax.random.uniform(ks[0], (d_in, d_out), jnp.float32,
                                    -scale, scale),
            # [Wz; Wr; Wh; Uz; Ur] stacked -> single MXU launch per layer.
            "WU": jnp.concatenate([wz, wr, wh, uz, ur],
                                  axis=0).astype(jnp.bfloat16),   # [5*d_in, d_in]
            "Uh": uh.astype(jnp.bfloat16),                        # [d_in, d_in]
            # [bz; br; bh] pre-broadcast to full lane width.
            "b_zrh": jnp.zeros((3 * d_in, d_out), jnp.float32),
        }
        params["layers"].append(layer_p)

    half = hidden_channels // 2
    key, k1, k2, k3, k4 = jax.random.split(key, 5)
    s1 = 1.0 / jnp.sqrt(jnp.float32(hidden_channels))
    s2 = 1.0 / jnp.sqrt(jnp.float32(half))
    w2 = jax.random.uniform(k3, (half, _NUM_CLASSES), jnp.float32, -s2, s2)
    b2 = jax.random.uniform(k4, (1, _NUM_CLASSES), jnp.float32, -s2, s2)
    params["cls"] = {
        "W1": jax.random.uniform(k1, (hidden_channels, half), jnp.float32,
                                 -s1, s1).astype(jnp.bfloat16),
        "b1": jax.random.uniform(k2, (1, half), jnp.float32, -s1, s1),
        # lane-dense padding of the final projection (extra lanes are zero and
        # are sliced off after the kernel).
        "W2_pad": jnp.pad(w2, ((0, 0), (0, _OUT_PAD - _NUM_CLASSES))
                          ).astype(jnp.bfloat16),
        "b2_pad": jnp.pad(b2, ((0, 0), (0, _OUT_PAD - _NUM_CLASSES))),
    }
    return params


if __name__ == "__main__":
    num_nodes = 16
    in_channels = 8
    hidden_channels = 32
    num_layers = 2

    key = jax.random.PRNGKey(0)
    k_params, k_x, k_adj = jax.random.split(key, 3)

    params = init_params(k_params, in_channels, hidden_channels, num_layers)

    x = jax.random.normal(k_x, (num_nodes, in_channels), jnp.float32)
    # random symmetric 0/1 adjacency (no self-loops; normalization adds them)
    a_rand = jax.random.uniform(k_adj, (num_nodes, num_nodes), jnp.float32)
    adj = (a_rand > 0.7).astype(jnp.float32)
    adj = jnp.maximum(adj, adj.T)
    adj = adj * (1.0 - jnp.eye(num_nodes, dtype=jnp.float32))

    out = evolvegcn_classifier_forward(params, x, adj)
    out = jax.block_until_ready(out)

    assert out.shape == (num_nodes, 2), out.shape
    assert out.dtype == jnp.float32
    assert bool(jnp.all(jnp.isfinite(out)))
    print("KERNEL_OK")
</pallas_src>

<mosaic_0001>
module attributes {stable_mosaic.version = 11 : i64} {
  func.func @kernel(%arg0: memref<16x16xf32, #tpu.memory_space<vmem>>, %arg1: memref<16x8xf32, #tpu.memory_space<vmem>>, %arg2: memref<40x8xbf16, #tpu.memory_space<vmem>>, %arg3: memref<8x8xbf16, #tpu.memory_space<vmem>>, %arg4: memref<24x32xf32, #tpu.memory_space<vmem>>, %arg5: memref<8x32xf32, #tpu.memory_space<vmem>>, %arg6: memref<160x32xbf16, #tpu.memory_space<vmem>>, %arg7: memref<32x32xbf16, #tpu.memory_space<vmem>>, %arg8: memref<96x32xf32, #tpu.memory_space<vmem>>, %arg9: memref<32x32xf32, #tpu.memory_space<vmem>>, %arg10: memref<32x16xbf16, #tpu.memory_space<vmem>>, %arg11: memref<1x16xf32, #tpu.memory_space<vmem>>, %arg12: memref<16x128xbf16, #tpu.memory_space<vmem>>, %arg13: memref<1x128xf32, #tpu.memory_space<vmem>>, %arg14: memref<16x128xf32, #tpu.memory_space<vmem>>) attributes {dimension_semantics = [], scalar_prefetch = 0 : i64, scratch_operands = 0 : i64, tpu.core_type = #tpu.core_type<tc>} {
    %c0 = arith.constant 0 : index
    %c0_0 = arith.constant 0 : index
    %0 = vector.load %arg0[%c0, %c0_0] : memref<16x16xf32, #tpu.memory_space<vmem>>, vector<16x16xf32>
    %cst = arith.constant dense<0.000000e+00> : vector<16xf32>
    %1 = vector.multi_reduction <add>, %0, %cst [1] : vector<16x16xf32> to vector<16xf32>
    %2 = vector.shape_cast %1 : vector<16xf32> to vector<16x1xf32>
    %cst_1 = arith.constant 1.000000e+00 : f32
    %3 = vector.broadcast %cst_1 : f32 to vector<16x1xf32>
    %4 = arith.addf %2, %3 : vector<16x1xf32>
    %5 = math.rsqrt %4 : vector<16x1xf32>
    %6 = arith.truncf %0 : vector<16x16xf32> to vector<16x16xbf16>
    %c0_2 = arith.constant 0 : index
    %c0_3 = arith.constant 0 : index
    %7 = vector.load %arg1[%c0_2, %c0_3] : memref<16x8xf32, #tpu.memory_space<vmem>>, vector<16x8xf32>
    %c0_4 = arith.constant 0 : index
    %c0_5 = arith.constant 0 : index
    %8 = vector.load %arg5[%c0_4, %c0_5] : memref<8x32xf32, #tpu.memory_space<vmem>>, vector<8x32xf32>
    %9 = arith.truncf %8 : vector<8x32xf32> to vector<8x32xbf16>
    %c0_6 = arith.constant 0 : index
    %c0_7 = arith.constant 0 : index
    %10 = vector.load %arg2[%c0_6, %c0_7] : memref<40x8xbf16, #tpu.memory_space<vmem>>, vector<40x8xbf16>
    %cst_8 = arith.constant dense<0.000000e+00> : vector<40x32xf32>
    %11 = tpu.matmul %10, %9, %cst_8 {dimension_numbers = #tpu.dot_dimension_numbers<[1], [0], [0], [1], [0, 0, 1, 1], [], []>} : vector<40x8xbf16>, vector<8x32xbf16>, vector<40x32xf32> -> vector<40x32xf32>
    %c0_9 = arith.constant 0 : index
    %c0_10 = arith.constant 0 : index
    %12 = vector.load %arg4[%c0_9, %c0_10] : memref<24x32xf32, #tpu.memory_space<vmem>>, vector<24x32xf32>
    %13 = vector.extract_strided_slice %11 {offsets = [0, 0], sizes = [8, 32], strides = [1, 1]} : vector<40x32xf32> to vector<8x32xf32>
    %14 = vector.extract_strided_slice %11 {offsets = [24, 0], sizes = [8, 32], strides = [1, 1]} : vector<40x32xf32> to vector<8x32xf32>
    %15 = arith.addf %13, %14 : vector<8x32xf32>
    %16 = vector.extract_strided_slice %12 {offsets = [0, 0], sizes = [8, 32], strides = [1, 1]} : vector<24x32xf32> to vector<8x32xf32>
    %17 = arith.addf %15, %16 : vector<8x32xf32>
    %18 = arith.negf %17 : vector<8x32xf32>
    %19 = math.exp %18 : vector<8x32xf32>
    %cst_11 = arith.constant 1.000000e+00 : f32
    %20 = vector.broadcast %cst_11 : f32 to vector<8x32xf32>
    %21 = arith.addf %20, %19 : vector<8x32xf32>
    %22 = arith.divf %20, %21 : vector<8x32xf32>
    %23 = vector.extract_strided_slice %11 {offsets = [8, 0], sizes = [8, 32], strides = [1, 1]} : vector<40x32xf32> to vector<8x32xf32>
    %24 = vector.extract_strided_slice %11 {offsets = [32, 0], sizes = [8, 32], strides = [1, 1]} : vector<40x32xf32> to vector<8x32xf32>
    %25 = arith.addf %23, %24 : vector<8x32xf32>
    %26 = vector.extract_strided_slice %12 {offsets = [8, 0], sizes = [8, 32], strides = [1, 1]} : vector<24x32xf32> to vector<8x32xf32>
    %27 = arith.addf %25, %26 : vector<8x32xf32>
    %28 = arith.negf %27 : vector<8x32xf32>
    %29 = math.exp %28 : vector<8x32xf32>
    %cst_12 = arith.constant 1.000000e+00 : f32
    %30 = vector.broadcast %cst_12 : f32 to vector<8x32xf32>
    %31 = arith.addf %30, %29 : vector<8x32xf32>
    %32 = arith.divf %30, %31 : vector<8x32xf32>
    %33 = vector.extract_strided_slice %11 {offsets = [16, 0], sizes = [8, 32], strides = [1, 1]} : vector<40x32xf32> to vector<8x32xf32>
    %c0_13 = arith.constant 0 : index
    %c0_14 = arith.constant 0 : index
    %34 = vector.load %arg3[%c0_13, %c0_14] : memref<8x8xbf16, #tpu.memory_space<vmem>>, vector<8x8xbf16>
    %35 = arith.mulf %32, %8 : vector<8x32xf32>
    %36 = arith.truncf %35 : vector<8x32xf32> to vector<8x32xbf16>
    %cst_15 = arith.constant dense<0.000000e+00> : vector<8x32xf32>
    %37 = tpu.matmul %34, %36, %cst_15 {dimension_numbers = #tpu.dot_dimension_numbers<[1], [0], [0], [1], [0, 0, 1, 1], [], []>} : vector<8x8xbf16>, vector<8x32xbf16>, vector<8x32xf32> -> vector<8x32xf32>
    %38 = arith.addf %33, %37 : vector<8x32xf32>
    %39 = vector.extract_strided_slice %12 {offsets = [16, 0], sizes = [8, 32], strides = [1, 1]} : vector<24x32xf32> to vector<8x32xf32>
    %40 = arith.addf %38, %39 : vector<8x32xf32>
    %41 = math.tanh %40 : vector<8x32xf32>
    %cst_16 = arith.constant 1.000000e+00 : f32
    %42 = vector.broadcast %cst_16 : f32 to vector<8x32xf32>
    %43 = arith.subf %42, %22 : vector<8x32xf32>
    %44 = arith.mulf %43, %8 : vector<8x32xf32>
    %45 = arith.mulf %22, %41 : vector<8x32xf32>
    %46 = arith.addf %44, %45 : vector<8x32xf32>
    %47 = arith.truncf %46 : vector<8x32xf32> to vector<8x32xbf16>
    %48 = vector.broadcast %5 : vector<16x1xf32> to vector<16x8xf32>
    %49 = arith.mulf %48, %7 : vector<16x8xf32>
    %50 = arith.truncf %49 : vector<16x8xf32> to vector<16x8xbf16>
    %cst_17 = arith.constant dense<0.000000e+00> : vector<16x8xf32>
    %51 = tpu.matmul %6, %50, %cst_17 {dimension_numbers = #tpu.dot_dimension_numbers<[1], [0], [0], [1], [0, 0, 1, 1], [], []>} : vector<16x16xbf16>, vector<16x8xbf16>, vector<16x8xf32> -> vector<16x8xf32>
    %52 = arith.addf %51, %49 : vector<16x8xf32>
    %53 = vector.broadcast %5 : vector<16x1xf32> to vector<16x8xf32>
    %54 = arith.mulf %53, %52 : vector<16x8xf32>
    %55 = arith.truncf %54 : vector<16x8xf32> to vector<16x8xbf16>
    %cst_18 = arith.constant dense<0.000000e+00> : vector<16x32xf32>
    %56 = tpu.matmul %55, %47, %cst_18 {dimension_numbers = #tpu.dot_dimension_numbers<[1], [0], [0], [1], [0, 0, 1, 1], [], []>} : vector<16x8xbf16>, vector<8x32xbf16>, vector<16x32xf32> -> vector<16x32xf32>
    %cst_19 = arith.constant 0.000000e+00 : f32
    %57 = vector.broadcast %cst_19 : f32 to vector<16x32xf32>
    %58 = arith.maximumf %56, %57 : vector<16x32xf32>
    %c0_20 = arith.constant 0 : index
    %c0_21 = arith.constant 0 : index
    %59 = vector.load %arg9[%c0_20, %c0_21] : memref<32x32xf32, #tpu.memory_space<vmem>>, vector<32x32xf32>
    %60 = arith.truncf %59 : vector<32x32xf32> to vector<32x32xbf16>
    %c0_22 = arith.constant 0 : index
    %c0_23 = arith.constant 0 : index
    %61 = vector.load %arg6[%c0_22, %c0_23] : memref<160x32xbf16, #tpu.memory_space<vmem>>, vector<160x32xbf16>
    %cst_24 = arith.constant dense<0.000000e+00> : vector<160x32xf32>
    %62 = tpu.matmul %61, %60, %cst_24 {dimension_numbers = #tpu.dot_dimension_numbers<[1], [0], [0], [1], [0, 0, 1, 1], [], []>} : vector<160x32xbf16>, vector<32x32xbf16>, vector<160x32xf32> -> vector<160x32xf32>
    %c0_25 = arith.constant 0 : index
    %c0_26 = arith.constant 0 : index
    %63 = vector.load %arg8[%c0_25, %c0_26] : memref<96x32xf32, #tpu.memory_space<vmem>>, vector<96x32xf32>
    %64 = vector.extract_strided_slice %62 {offsets = [0, 0], sizes = [32, 32], strides = [1, 1]} : vector<160x32xf32> to vector<32x32xf32>
    %65 = vector.extract_strided_slice %62 {offsets = [96, 0], sizes = [32, 32], strides = [1, 1]} : vector<160x32xf32> to vector<32x32xf32>
    %66 = arith.addf %64, %65 : vector<32x32xf32>
    %67 = vector.extract_strided_slice %63 {offsets = [0, 0], sizes = [32, 32], strides = [1, 1]} : vector<96x32xf32> to vector<32x32xf32>
    %68 = arith.addf %66, %67 : vector<32x32xf32>
    %69 = arith.negf %68 : vector<32x32xf32>
    %70 = math.exp %69 : vector<32x32xf32>
    %cst_27 = arith.constant 1.000000e+00 : f32
    %71 = vector.broadcast %cst_27 : f32 to vector<32x32xf32>
    %72 = arith.addf %71, %70 : vector<32x32xf32>
    %73 = arith.divf %71, %72 : vector<32x32xf32>
    %74 = vector.extract_strided_slice %62 {offsets = [32, 0], sizes = [32, 32], strides = [1, 1]} : vector<160x32xf32> to vector<32x32xf32>
    %75 = vector.extract_strided_slice %62 {offsets = [128, 0], sizes = [32, 32], strides = [1, 1]} : vector<160x32xf32> to vector<32x32xf32>
    %76 = arith.addf %74, %75 : vector<32x32xf32>
    %77 = vector.extract_strided_slice %63 {offsets = [32, 0], sizes = [32, 32], strides = [1, 1]} : vector<96x32xf32> to vector<32x32xf32>
    %78 = arith.addf %76, %77 : vector<32x32xf32>
    %79 = arith.negf %78 : vector<32x32xf32>
    %80 = math.exp %79 : vector<32x32xf32>
    %cst_28 = arith.constant 1.000000e+00 : f32
    %81 = vector.broadcast %cst_28 : f32 to vector<32x32xf32>
    %82 = arith.addf %81, %80 : vector<32x32xf32>
    %83 = arith.divf %81, %82 : vector<32x32xf32>
    %84 = vector.extract_strided_slice %62 {offsets = [64, 0], sizes = [32, 32], strides = [1, 1]} : vector<160x32xf32> to vector<32x32xf32>
    %c0_29 = arith.constant 0 : index
    %c0_30 = arith.constant 0 : index
    %85 = vector.load %arg7[%c0_29, %c0_30] : memref<32x32xbf16, #tpu.memory_space<vmem>>, vector<32x32xbf16>
    %86 = arith.mulf %83, %59 : vector<32x32xf32>
    %87 = arith.truncf %86 : vector<32x32xf32> to vector<32x32xbf16>
    %cst_31 = arith.constant dense<0.000000e+00> : vector<32x32xf32>
    %88 = tpu.matmul %85, %87, %cst_31 {dimension_numbers = #tpu.dot_dimension_numbers<[1], [0], [0], [1], [0, 0, 1, 1], [], []>} : vector<32x32xbf16>, vector<32x32xbf16>, vector<32x32xf32> -> vector<32x32xf32>
    %89 = arith.addf %84, %88 : vector<32x32xf32>
    %90 = vector.extract_strided_slice %63 {offsets = [64, 0], sizes = [32, 32], strides = [1, 1]} : vector<96x32xf32> to vector<32x32xf32>
    %91 = arith.addf %89, %90 : vector<32x32xf32>
    %92 = math.tanh %91 : vector<32x32xf32>
    %cst_32 = arith.constant 1.000000e+00 : f32
    %93 = vector.broadcast %cst_32 : f32 to vector<32x32xf32>
    %94 = arith.subf %93, %73 : vector<32x32xf32>
    %95 = arith.mulf %94, %59 : vector<32x32xf32>
    %96 = arith.mulf %73, %92 : vector<32x32xf32>
    %97 = arith.addf %95, %96 : vector<32x32xf32>
    %98 = arith.truncf %97 : vector<32x32xf32> to vector<32x32xbf16>
    %99 = vector.broadcast %5 : vector<16x1xf32> to vector<16x32xf32>
    %100 = arith.mulf %99, %58 : vector<16x32xf32>
    %101 = arith.truncf %100 : vector<16x32xf32> to vector<16x32xbf16>
    %cst_33 = arith.constant dense<0.000000e+00> : vector<16x32xf32>
    %102 = tpu.matmul %6, %101, %cst_33 {dimension_numbers = #tpu.dot_dimension_numbers<[1], [0], [0], [1], [0, 0, 1, 1], [], []>} : vector<16x16xbf16>, vector<16x32xbf16>, vector<16x32xf32> -> vector<16x32xf32>
    %103 = arith.addf %102, %100 : vector<16x32xf32>
    %104 = vector.broadcast %5 : vector<16x1xf32> to vector<16x32xf32>
    %105 = arith.mulf %104, %103 : vector<16x32xf32>
    %106 = arith.truncf %105 : vector<16x32xf32> to vector<16x32xbf16>
    %cst_34 = arith.constant dense<0.000000e+00> : vector<16x32xf32>
    %107 = tpu.matmul %106, %98, %cst_34 {dimension_numbers = #tpu.dot_dimension_numbers<[1], [0], [0], [1], [0, 0, 1, 1], [], []>} : vector<16x32xbf16>, vector<32x32xbf16>, vector<16x32xf32> -> vector<16x32xf32>
    %cst_35 = arith.constant 0.000000e+00 : f32
    %108 = vector.broadcast %cst_35 : f32 to vector<16x32xf32>
    %109 = arith.maximumf %107, %108 : vector<16x32xf32>
    %110 = arith.truncf %109 : vector<16x32xf32> to vector<16x32xbf16>
    %c0_36 = arith.constant 0 : index
    %c0_37 = arith.constant 0 : index
    %111 = vector.load %arg10[%c0_36, %c0_37] : memref<32x16xbf16, #tpu.memory_space<vmem>>, vector<32x16xbf16>
    %cst_38 = arith.constant dense<0.000000e+00> : vector<16x16xf32>
    %112 = tpu.matmul %110, %111, %cst_38 {dimension_numbers = #tpu.dot_dimension_numbers<[1], [0], [0], [1], [0, 0, 1, 1], [], []>} : vector<16x32xbf16>, vector<32x16xbf16>, vector<16x16xf32> -> vector<16x16xf32>
    %c0_39 = arith.constant 0 : index
    %c0_40 = arith.constant 0 : index
    %113 = vector.load %arg11[%c0_39, %c0_40] : memref<1x16xf32, #tpu.memory_space<vmem>>, vector<1x16xf32>
    %114 = vector.broadcast %113 : vector<1x16xf32> to vector<16x16xf32>
    %115 = arith.addf %112, %114 : vector<16x16xf32>
    %cst_41 = arith.constant 0.000000e+00 : f32
    %116 = vector.broadcast %cst_41 : f32 to vector<16x16xf32>
    %117 = arith.maximumf %115, %116 : vector<16x16xf32>
    %118 = arith.truncf %117 : vector<16x16xf32> to vector<16x16xbf16>
    %c0_42 = arith.constant 0 : index
    %c0_43 = arith.constant 0 : index
    %119 = vector.load %arg12[%c0_42, %c0_43] : memref<16x128xbf16, #tpu.memory_space<vmem>>, vector<16x128xbf16>
    %cst_44 = arith.constant dense<0.000000e+00> : vector<16x128xf32>
    %120 = tpu.matmul %118, %119, %cst_44 {dimension_numbers = #tpu.dot_dimension_numbers<[1], [0], [0], [1], [0, 0, 1, 1], [], []>} : vector<16x16xbf16>, vector<16x128xbf16>, vector<16x128xf32> -> vector<16x128xf32>
    %c0_45 = arith.constant 0 : index
    %c0_46 = arith.constant 0 : index
    %121 = vector.load %arg13[%c0_45, %c0_46] : memref<1x128xf32, #tpu.memory_space<vmem>>, vector<1x128xf32>
    %122 = vector.broadcast %121 : vector<1x128xf32> to vector<16x128xf32>
    %123 = arith.addf %120, %122 : vector<16x128xf32>
    %c0_47 = arith.constant 0 : index
    %c0_48 = arith.constant 0 : index
    %124 = vector.load %arg14[%c0_47, %c0_48] : memref<16x128xf32, #tpu.memory_space<vmem>>, vector<16x128xf32>
    tpu.vector_store %arg14[%c0_47, %c0_48], %123 {strides = array<i32>} : memref<16x128xf32, #tpu.memory_space<vmem>>, vector<16x128xf32>,
    return
  }
}

</mosaic_0001>

<llo_original>
// kernel: evolvegcn_classifier_forward.1
$region0: #{evolvegcn_classifier_forward.1}
  #allocation0 [shape = 'u32[]', space=smem, size = 0x4, offset = 0x4, fixed_abs, tag = 'smem constant byte address 0x4 - core index']
  #allocation1 [shape = 'u32[144,128]{1,0:T(1,128)}', space=vmem, size = 0x12000, scoped, tag = 'internal scratch']
  %s0 = inlined_call_operand.hbm [shape: f32[16,16], index: 0, kind: input, shape index: {}]
  %s1 = inlined_call_operand.hbm [shape: f32[16,8], index: 1, kind: input, shape index: {}]
  %s2 = inlined_call_operand.hbm [shape: bf16[40,8], index: 2, kind: input, shape index: {}]
  %s3 = inlined_call_operand.hbm [shape: bf16[8,8], index: 3, kind: input, shape index: {}]
  %s4 = inlined_call_operand.hbm [shape: f32[24,32], index: 4, kind: input, shape index: {}]
  %s5 = inlined_call_operand.hbm [shape: f32[8,32], index: 5, kind: input, shape index: {}]
  %s6 = inlined_call_operand.hbm [shape: bf16[160,32], index: 6, kind: input, shape index: {}]
  %s7 = inlined_call_operand.hbm [shape: bf16[32,32], index: 7, kind: input, shape index: {}]
  %s8 = inlined_call_operand.hbm [shape: f32[96,32], index: 8, kind: input, shape index: {}]
  %s9 = inlined_call_operand.hbm [shape: f32[32,32], index: 9, kind: input, shape index: {}]
  %s10 = inlined_call_operand.hbm [shape: bf16[32,16], index: 10, kind: input, shape index: {}]
  %s11 = inlined_call_operand.hbm [shape: f32[1,16], index: 11, kind: input, shape index: {}]
  %s12 = inlined_call_operand.hbm [shape: bf16[16,128], index: 12, kind: input, shape index: {}]
  %s13 = inlined_call_operand.hbm [shape: f32[1,128], index: 13, kind: input, shape index: {}]
  %s14 = inlined_call_operand.hbm [shape: f32[16,128], index: 14, kind: output, shape index: {}]
  %s15 = sld [smem:[#allocation0]]
  $region122: #{evolvegcn_classifier_forward.1} parent=0
    _
  %s17 = ssub.s32 1, %s15
  %s18 = scalar_select 0, %s17, %s15
  $region1: #{evolvegcn_classifier_forward.1} parent=0
    #allocation2 [shape = 'u8[8192]{0}', space=vmem, size = 0x2000, scoped, tag = 'input window, operand 0, single buffered']
    #allocation3 [shape = 's32[1]{0}', space=sflag, size = 0x4, scoped, tag = 'scoped memory for evolvegcn_classifier_forward.1']
    #allocation4 [shape = 's32[1]{0}', space=sflag, size = 0x4, scoped, tag = 'scoped memory for evolvegcn_classifier_forward.1']
    #allocation5 [shape = 'u8[8192]{0}', space=vmem, size = 0x2000, scoped, tag = 'input window, operand 1, single buffered']
    #allocation6 [shape = 's32[1]{0}', space=sflag, size = 0x4, scoped, tag = 'scoped memory for evolvegcn_classifier_forward.1']
    #allocation7 [shape = 'u8[10240]{0}', space=vmem, size = 0x2800, scoped, tag = 'input window, operand 2, single buffered']
    #allocation8 [shape = 'u8[2048]{0}', space=vmem, size = 0x800, scoped, tag = 'input window, operand 3, single buffered']
    #allocation9 [shape = 's32[1]{0}', space=sflag, size = 0x4, scoped, tag = 'scoped memory for evolvegcn_classifier_forward.1']
    #allocation10 [shape = 'u8[12288]{0}', space=vmem, size = 0x3000, scoped, tag = 'input window, operand 4, single buffered']
    #allocation11 [shape = 'u8[4096]{0}', space=vmem, size = 0x1000, scoped, tag = 'input window, operand 5, single buffered']
    #allocation12 [shape = 's32[1]{0}', space=sflag, size = 0x4, scoped, tag = 'scoped memory for evolvegcn_classifier_forward.1']
    #allocation13 [shape = 'u8[40960]{0}', space=vmem, size = 0xa000, scoped, tag = 'input window, operand 6, single buffered']
    #allocation14 [shape = 'u8[8192]{0}', space=vmem, size = 0x2000, scoped, tag = 'input window, operand 7, single buffered']
    #allocation15 [shape = 's32[1]{0}', space=sflag, size = 0x4, scoped, tag = 'scoped memory for evolvegcn_classifier_forward.1']
    #allocation16 [shape = 'u8[49152]{0}', space=vmem, size = 0xc000, scoped, tag = 'input window, operand 8, single buffered']
    #allocation17 [shape = 'u8[16384]{0}', space=vmem, size = 0x4000, scoped, tag = 'input window, operand 9, single buffered']
    #allocation18 [shape = 's32[1]{0}', space=sflag, size = 0x4, scoped, tag = 'scoped memory for evolvegcn_classifier_forward.1']
    #allocation19 [shape = 'u8[8192]{0}', space=vmem, size = 0x2000, scoped, tag = 'input window, operand 10, single buffered']
    #allocation20 [shape = 'u8[512]{0}', space=vmem, size = 0x400, scoped, tag = 'input window, operand 11, single buffered']
    #allocation21 [shape = 's32[1]{0}', space=sflag, size = 0x4, scoped, tag = 'scoped memory for evolvegcn_classifier_forward.1']
    #allocation22 [shape = 'u8[4096]{0}', space=vmem, size = 0x1000, scoped, tag = 'input window, operand 12, single buffered']
    #allocation23 [shape = 'u8[512]{0}', space=vmem, size = 0x400, scoped, tag = 'input window, operand 13, single buffered']
    #allocation24 [shape = 's32[1]{0}', space=sflag, size = 0x4, scoped, tag = 'scoped memory for evolvegcn_classifier_forward.1']
    #allocation25 [shape = 'u8[8192]{0}', space=vmem, size = 0x2000, scoped, tag = 'output window, operand 0, single buffered']
    %19 = vsyncpa [#allocation3], 0
    %20 = vsyncpa [#allocation6], 0
    %21 = vsyncpa [#allocation9], 0
    %22 = vsyncpa [#allocation12], 0
    %23 = vsyncpa [#allocation15], 0
    %24 = vsyncpa [#allocation18], 0
    %25 = vsyncpa [#allocation21], 0
    %26 = vsyncpa [#allocation24], 0
    %27 = vsyncpa [#allocation4], 0
    // Predicated region
    $region2: #{evolvegcn_classifier_forward.1} parent=1 // pred_check
      _
    $region3: #{evolvegcn_classifier_forward.1} parent=1 // pred_check_branch
      %29 = sbr.rel (0) target = $region5
    $region4: #{evolvegcn_classifier_forward.1} parent=1 // pred_region
      %s31 = ssub.s32 256, 256
      %32 = vsyncadd [#allocation3], %s31
      %s33 = sshll.u32 [#allocation2], 4
      %s34 = int_to_ptr.vmem [resolvable:$true] %s33
      %39 = dma.hbm_to_vmem [thread:$0]  %s0, 256, %s34, [#allocation3], 128, 128, 8
    $region5: #{evolvegcn_classifier_forward.1} parent=1 // pred_fallthru
      _
    // Predicated region
    $region6: #{evolvegcn_classifier_forward.1} parent=1 // pred_check
      _
    $region7: #{evolvegcn_classifier_forward.1} parent=1 // pred_check_branch
      %41 = sbr.rel (0) target = $region9
    $region8: #{evolvegcn_classifier_forward.1} parent=1 // pred_region
      %s43 = ssub.s32 256, 256
      %44 = vsyncadd [#allocation6], %s43
      %s45 = sshll.u32 [#allocation5], 4
      %s46 = int_to_ptr.vmem [resolvable:$true] %s45
      %51 = dma.hbm_to_vmem [thread:$0]  %s1, 256, %s46, [#allocation6], 128, 128, 8
    $region9: #{evolvegcn_classifier_forward.1} parent=1 // pred_fallthru
      _
    // Predicated region
    $region10: #{evolvegcn_classifier_forward.1} parent=1 // pred_check
      _
    $region11: #{evolvegcn_classifier_forward.1} parent=1 // pred_check_branch
      %53 = sbr.rel (0) target = $region13
    $region12: #{evolvegcn_classifier_forward.1} parent=1 // pred_region
      %s55 = ssub.s32 320, 320
      %56 = vsyncadd [#allocation6], %s55
      %s57 = sshll.u32 [#allocation7], 4
      %s58 = int_to_ptr.vmem [resolvable:$true] %s57
      %63 = dma.hbm_to_vmem [thread:$0]  %s2, 320, %s58, [#allocation6], 64, 64, 4
    $region13: #{evolvegcn_classifier_forward.1} parent=1 // pred_fallthru
      _
    // Predicated region
    $region14: #{evolvegcn_classifier_forward.1} parent=1 // pred_check
      _
    $region15: #{evolvegcn_classifier_forward.1} parent=1 // pred_check_branch
      %65 = sbr.rel (0) target = $region17
    $region16: #{evolvegcn_classifier_forward.1} parent=1 // pred_region
      %s67 = ssub.s32 64, 64
      %68 = vsyncadd [#allocation9], %s67
      %s70 = sshll.u32 [#allocation8], 4
      %s71 = int_to_ptr.vmem [resolvable:$true] %s70
      %73 = dma.hbm_to_vmem [thread:$0]  %s3, 64, %s71, [#allocation9]
    $region17: #{evolvegcn_classifier_forward.1} parent=1 // pred_fallthru
      _
    // Predicated region
    $region18: #{evolvegcn_classifier_forward.1} parent=1 // pred_check
      _
    $region19: #{evolvegcn_classifier_forward.1} parent=1 // pred_check_branch
      %75 = sbr.rel (0) target = $region21
    $region20: #{evolvegcn_classifier_forward.1} parent=1 // pred_region
      %s77 = ssub.s32 384, 384
      %78 = vsyncadd [#allocation9], %s77
      %s79 = sshll.u32 [#allocation10], 4
      %s80 = int_to_ptr.vmem [resolvable:$true] %s79
      %85 = dma.hbm_to_vmem [thread:$0]  %s4, 384, %s80, [#allocation9], 128, 128, 8
    $region21: #{evolvegcn_classifier_forward.1} parent=1 // pred_fallthru
      _
    // Predicated region
    $region22: #{evolvegcn_classifier_forward.1} parent=1 // pred_check
      _
    $region23: #{evolvegcn_classifier_forward.1} parent=1 // pred_check_branch
      %87 = sbr.rel (0) target = $region25
    $region24: #{evolvegcn_classifier_forward.1} parent=1 // pred_region
      %s89 = ssub.s32 128, 128
      %90 = vsyncadd [#allocation12], %s89
      %s92 = sshll.u32 [#allocation11], 4
      %s93 = int_to_ptr.vmem [resolvable:$true] %s92
      %95 = dma.hbm_to_vmem [thread:$0]  %s5, 128, %s93, [#allocation12]
    $region25: #{evolvegcn_classifier_forward.1} parent=1 // pred_fallthru
      _
    // Predicated region
    $region26: #{evolvegcn_classifier_forward.1} parent=1 // pred_check
      _
    $region27: #{evolvegcn_classifier_forward.1} parent=1 // pred_check_branch
      %97 = sbr.rel (0) target = $region29
    $region28: #{evolvegcn_classifier_forward.1} parent=1 // pred_region
      %s99 = ssub.s32 1280, 1280
      %100 = vsyncadd [#allocation12], %s99
      %s101 = sshll.u32 [#allocation13], 4
      %s102 = int_to_ptr.vmem [resolvable:$true] %s101
      %107 = dma.hbm_to_vmem [thread:$0]  %s6, 1280, %s102, [#allocation12], 64, 64, 4
    $region29: #{evolvegcn_classifier_forward.1} parent=1 // pred_fallthru
      _
    // Predicated region
    $region30: #{evolvegcn_classifier_forward.1} parent=1 // pred_check
      _
    $region31: #{evolvegcn_classifier_forward.1} parent=1 // pred_check_branch
      %109 = sbr.rel (0) target = $region33
    $region32: #{evolvegcn_classifier_forward.1} parent=1 // pred_region
      %s111 = ssub.s32 256, 256
      %112 = vsyncadd [#allocation15], %s111
      %s113 = sshll.u32 [#allocation14], 4
      %s114 = int_to_ptr.vmem [resolvable:$true] %s113
      %119 = dma.hbm_to_vmem [thread:$0]  %s7, 256, %s114, [#allocation15], 64, 64, 4
    $region33: #{evolvegcn_classifier_forward.1} parent=1 // pred_fallthru
      _
    // Predicated region
    $region34: #{evolvegcn_classifier_forward.1} parent=1 // pred_check
      _
    $region35: #{evolvegcn_classifier_forward.1} parent=1 // pred_check_branch
      %121 = sbr.rel (0) target = $region37
    $region36: #{evolvegcn_classifier_forward.1} parent=1 // pred_region
      %s123 = ssub.s32 1536, 1536
      %124 = vsyncadd [#allocation15], %s123
      %s125 = sshll.u32 [#allocation16], 4
      %s126 = int_to_ptr.vmem [resolvable:$true] %s125
      %131 = dma.hbm_to_vmem [thread:$0]  %s8, 1536, %s126, [#allocation15], 128, 128, 8
    $region37: #{evolvegcn_classifier_forward.1} parent=1 // pred_fallthru
      _
    // Predicated region
    $region38: #{evolvegcn_classifier_forward.1} parent=1 // pred_check
      _
    $region39: #{evolvegcn_classifier_forward.1} parent=1 // pred_check_branch
      %133 = sbr.rel (0) target = $region41
    $region40: #{evolvegcn_classifier_forward.1} parent=1 // pred_region
      %s135 = ssub.s32 512, 512
      %136 = vsyncadd [#allocation18], %s135
      %s137 = sshll.u32 [#allocation17], 4
      %s138 = int_to_ptr.vmem [resolvable:$true] %s137
      %143 = dma.hbm_to_vmem [thread:$0]  %s9, 512, %s138, [#allocation18], 128, 128, 8
    $region41: #{evolvegcn_classifier_forward.1} parent=1 // pred_fallthru
      _
    // Predicated region
    $region42: #{evolvegcn_classifier_forward.1} parent=1 // pred_check
      _
    $region43: #{evolvegcn_classifier_forward.1} parent=1 // pred_check_branch
      %145 = sbr.rel (0) target = $region45
    $region44: #{evolvegcn_classifier_forward.1} parent=1 // pred_region
      %s147 = ssub.s32 256, 256
      %148 = vsyncadd [#allocation18], %s147
      %s149 = sshll.u32 [#allocation19], 4
      %s150 = int_to_ptr.vmem [resolvable:$true] %s149
      %155 = dma.hbm_to_vmem [thread:$0]  %s10, 256, %s150, [#allocation18], 64, 64, 4
    $region45: #{evolvegcn_classifier_forward.1} parent=1 // pred_fallthru
      _
    // Predicated region
    $region46: #{evolvegcn_classifier_forward.1} parent=1 // pred_check
      _
    $region47: #{evolvegcn_classifier_forward.1} parent=1 // pred_check_branch
      %157 = sbr.rel (0) target = $region49
    $region48: #{evolvegcn_classifier_forward.1} parent=1 // pred_region
      %s159 = ssub.s32 16, 16
      %160 = vsyncadd [#allocation21], %s159
      %s162 = sshll.u32 [#allocation20], 4
      %s163 = int_to_ptr.vmem [resolvable:$true] %s162
      %165 = dma.hbm_to_vmem [thread:$0]  %s11, 16, %s163, [#allocation21]
    $region49: #{evolvegcn_classifier_forward.1} parent=1 // pred_fallthru
      _
    // Predicated region
    $region50: #{evolvegcn_classifier_forward.1} parent=1 // pred_check
      _
    $region51: #{evolvegcn_classifier_forward.1} parent=1 // pred_check_branch
      %167 = sbr.rel (0) target = $region53
    $region52: #{evolvegcn_classifier_forward.1} parent=1 // pred_region
      %s169 = ssub.s32 128, 128
      %170 = vsyncadd [#allocation21], %s169
      %s171 = sshll.u32 [#allocation22], 4
      %s172 = int_to_ptr.vmem [resolvable:$true] %s171
      %177 = dma.hbm_to_vmem [thread:$0]  %s12, 128, %s172, [#allocation21], 64, 64, 4
    $region53: #{evolvegcn_classifier_forward.1} parent=1 // pred_fallthru
      _
    // Predicated region
    $region54: #{evolvegcn_classifier_forward.1} parent=1 // pred_check
      _
    $region55: #{evolvegcn_classifier_forward.1} parent=1 // pred_check_branch
      %179 = sbr.rel (0) target = $region57
    $region56: #{evolvegcn_classifier_forward.1} parent=1 // pred_region
      %s181 = ssub.s32 16, 16
      %182 = vsyncadd [#allocation24], %s181
      %s184 = sshll.u32 [#allocation23], 4
      %s185 = int_to_ptr.vmem [resolvable:$true] %s184
      %187 = dma.hbm_to_vmem [thread:$0]  %s13, 16, %s185, [#allocation24]
    $region57: #{evolvegcn_classifier_forward.1} parent=1 // pred_fallthru
      _
    // Predicated region
    $region58: #{evolvegcn_classifier_forward.1} parent=1 // pred_check
      _
    $region59: #{evolvegcn_classifier_forward.1} parent=1 // pred_check_branch
      %189 = sbr.rel (0) target = $region61
    $region60: #{evolvegcn_classifier_forward.1} parent=1 // pred_region
      %190 = dma.done [#allocation3], 256
    $region61: #{evolvegcn_classifier_forward.1} parent=1 // pred_fallthru
      _
    // Predicated region
    $region62: #{evolvegcn_classifier_forward.1} parent=1 // pred_check
      _
    $region63: #{evolvegcn_classifier_forward.1} parent=1 // pred_check_branch
      %192 = sbr.rel (0) target = $region65
    $region64: #{evolvegcn_classifier_forward.1} parent=1 // pred_region
      %193 = dma.done [#allocation6], 256
    $region65: #{evolvegcn_classifier_forward.1} parent=1 // pred_fallthru
      _
    // Predicated region
    $region66: #{evolvegcn_classifier_forward.1} parent=1 // pred_check
      _
    $region67: #{evolvegcn_classifier_forward.1} parent=1 // pred_check_branch
      %195 = sbr.rel (0) target = $region69
    $region68: #{evolvegcn_classifier_forward.1} parent=1 // pred_region
      %196 = dma.done [#allocation6], 320
    $region69: #{evolvegcn_classifier_forward.1} parent=1 // pred_fallthru
      _
    // Predicated region
    $region70: #{evolvegcn_classifier_forward.1} parent=1 // pred_check
      _
    $region71: #{evolvegcn_classifier_forward.1} parent=1 // pred_check_branch
      %198 = sbr.rel (0) target = $region73
    $region72: #{evolvegcn_classifier_forward.1} parent=1 // pred_region
      %199 = dma.done [#allocation9], 64
    $region73: #{evolvegcn_classifier_forward.1} parent=1 // pred_fallthru
      _
    // Predicated region
    $region74: #{evolvegcn_classifier_forward.1} parent=1 // pred_check
      _
    $region75: #{evolvegcn_classifier_forward.1} parent=1 // pred_check_branch
      %201 = sbr.rel (0) target = $region77
    $region76: #{evolvegcn_classifier_forward.1} parent=1 // pred_region
      %202 = dma.done [#allocation9], 384
    $region77: #{evolvegcn_classifier_forward.1} parent=1 // pred_fallthru
      _
    // Predicated region
    $region78: #{evolvegcn_classifier_forward.1} parent=1 // pred_check
      _
    $region79: #{evolvegcn_classifier_forward.1} parent=1 // pred_check_branch
      %204 = sbr.rel (0) target = $region81
    $region80: #{evolvegcn_classifier_forward.1} parent=1 // pred_region
      %205 = dma.done [#allocation12], 128
    $region81: #{evolvegcn_classifier_forward.1} parent=1 // pred_fallthru
      _
    // Predicated region
    $region82: #{evolvegcn_classifier_forward.1} parent=1 // pred_check
      _
    $region83: #{evolvegcn_classifier_forward.1} parent=1 // pred_check_branch
      %207 = sbr.rel (0) target = $region85
    $region84: #{evolvegcn_classifier_forward.1} parent=1 // pred_region
      %208 = dma.done [#allocation12], 1280
    $region85: #{evolvegcn_classifier_forward.1} parent=1 // pred_fallthru
      _
    // Predicated region
    $region86: #{evolvegcn_classifier_forward.1} parent=1 // pred_check
      _
    $region87: #{evolvegcn_classifier_forward.1} parent=1 // pred_check_branch
      %210 = sbr.rel (0) target = $region89
    $region88: #{evolvegcn_classifier_forward.1} parent=1 // pred_region
      %211 = dma.done [#allocation15], 256
    $region89: #{evolvegcn_classifier_forward.1} parent=1 // pred_fallthru
      _
    // Predicated region
    $region90: #{evolvegcn_classifier_forward.1} parent=1 // pred_check
      _
    $region91: #{evolvegcn_classifier_forward.1} parent=1 // pred_check_branch
      %213 = sbr.rel (0) target = $region93
    $region92: #{evolvegcn_classifier_forward.1} parent=1 // pred_region
      %214 = dma.done [#allocation15], 1536
    $region93: #{evolvegcn_classifier_forward.1} parent=1 // pred_fallthru
      _
    // Predicated region
    $region94: #{evolvegcn_classifier_forward.1} parent=1 // pred_check
      _
    $region95: #{evolvegcn_classifier_forward.1} parent=1 // pred_check_branch
      %216 = sbr.rel (0) target = $region97
    $region96: #{evolvegcn_classifier_forward.1} parent=1 // pred_region
      %217 = dma.done [#allocation18], 512
    $region97: #{evolvegcn_classifier_forward.1} parent=1 // pred_fallthru
      _
    // Predicated region
    $region98: #{evolvegcn_classifier_forward.1} parent=1 // pred_check
      _
    $region99: #{evolvegcn_classifier_forward.1} parent=1 // pred_check_branch
      %219 = sbr.rel (0) target = $region101
    $region100: #{evolvegcn_classifier_forward.1} parent=1 // pred_region
      %220 = dma.done [#allocation18], 256
    $region101: #{evolvegcn_classifier_forward.1} parent=1 // pred_fallthru
      _
    // Predicated region
    $region102: #{evolvegcn_classifier_forward.1} parent=1 // pred_check
      _
    $region103: #{evolvegcn_classifier_forward.1} parent=1 // pred_check_branch
      %222 = sbr.rel (0) target = $region105
    $region104: #{evolvegcn_classifier_forward.1} parent=1 // pred_region
      %223 = dma.done [#allocation21], 16
    $region105: #{evolvegcn_classifier_forward.1} parent=1 // pred_fallthru
      _
    // Predicated region
    $region106: #{evolvegcn_classifier_forward.1} parent=1 // pred_check
      _
    $region107: #{evolvegcn_classifier_forward.1} parent=1 // pred_check_branch
      %225 = sbr.rel (0) target = $region109
    $region108: #{evolvegcn_classifier_forward.1} parent=1 // pred_region
      %226 = dma.done [#allocation21], 128
    $region109: #{evolvegcn_classifier_forward.1} parent=1 // pred_fallthru
      _
    // Predicated region
    $region110: #{evolvegcn_classifier_forward.1} parent=1 // pred_check
      _
    $region111: #{evolvegcn_classifier_forward.1} parent=1 // pred_check_branch
      %228 = sbr.rel (0) target = $region113
    $region112: #{evolvegcn_classifier_forward.1} parent=1 // pred_region
      %229 = dma.done [#allocation24], 16
    $region113: #{evolvegcn_classifier_forward.1} parent=1 // pred_fallthru
      _
    %v231 = vld [vmem:[#allocation2] sm:$0xff]
    %v232 = vld [vmem:[#allocation2 + $0x8] sm:$0xff]
    %vm233 = vcmask 130048
    %v234 = vsel %vm233, %v231, 0.0
    %235 = vadd.xlane.f32.xlu0 %v234
    %v236 = vpop.xlane.xlu0 %235
    %v237 = vsel %vm233, %v232, 0.0
    %238 = vadd.xlane.f32.xlu0 %v237
    %v239 = vpop.xlane.xlu0 %238
    %v240 = vadd.f32 %v236, 1.0
    %v241 = vadd.f32 %v239, 1.0
    %v242 = vrsqrt.pop %v240
    %v243 = vrsqrt.pop %v241
    %v244 = vpack.c.bf16 %v232, %v231
    %v245 = vld [vmem:[#allocation5] sm:$0xff]
    %v246 = vld [vmem:[#allocation5 + $0x8] sm:$0xff]
    %v247 = vld [vmem:[#allocation11] sm:$0xff]
    %v248 = vpack.c.bf16 %v247, %v247
    %v249 = vld [vmem:[#allocation7] sm:$0xf]
    %v250 = vld [vmem:[#allocation7 + $0x4] sm:$0xf]
    %v251 = vld [vmem:[#allocation7 + $0x8] sm:$0xf]
    %v252 = vld [vmem:[#allocation7 + $0xc] sm:$0xf]
    %v253 = vld [vmem:[#allocation7 + $0x10] sm:$0xf]
    %v259 = vunpack.c.l.b16 %v249
    %v260 = vunpack.c.l.b16 %v250
    %v261 = vunpack.c.l.b16 %v251
    %v262 = vunpack.c.l.b16 %v252
    %v263 = vunpack.c.l.b16 %v253
    %v264 = vpack.c.b16 %v260, %v259
    %v265 = vpack.c.b16 %v262, %v261
    %v266 = vpack.c.b16 %v263, %v263
    %vm267 = vcmask 64512
    %v269 = vsel %vm267, %v264, 0
    %v272 = vsel %vm267, %v265, 0
    %v275 = vsel %vm267, %v266, 0
    %vm277 = vcmask 1043456
    %v279 = vsel %vm277, %v248, 0
    %281 = vmatprep.subr.bf16.mxu0 0
    %282 = vmatpush1.bf16.msra.mxu0 %v279
    %283 = vmatprep.subr.bf16.mxu0 0
    %284 = vmatpush1.bf16.msra.mxu0 0
    %285 = vmatprep.subr.bf16.mxu0 0
    %286 = vmatpush1.bf16.msra.mxu0 0
    %287 = vmatprep.subr.bf16.mxu0 0
    %288 = vmatpush1.bf16.msra.mxu0 0
    %289 = vmatprep.subr.bf16.mxu0 0
    %290 = vmatpush1.bf16.msra.mxu0 0
    %291 = vmatprep.subr.bf16.mxu0 0
    %292 = vmatpush1.bf16.msra.mxu0 0
    %293 = vmatprep.subr.bf16.mxu0 0
    %294 = vmatpush1.bf16.msra.mxu0 0
    %295 = vmatprep.subr.bf16.mxu0 0
    %296 = vmatpush1.bf16.msra.mxu0 0
    %297 = vmatprep.subr.bf16.mxu0 0
    %298 = vmatpush1.bf16.msra.mxu0 0
    %299 = vmatprep.subr.bf16.mxu0 0
    %300 = vmatpush1.bf16.msra.mxu0 0
    %301 = vmatprep.subr.bf16.mxu0 0
    %302 = vmatpush1.bf16.msra.mxu0 0
    %303 = vmatprep.subr.bf16.mxu0 0
    %304 = vmatpush1.bf16.msra.mxu0 0
    %305 = vmatprep.subr.bf16.mxu0 0
    %306 = vmatpush1.bf16.msra.mxu0 0
    %307 = vmatprep.subr.bf16.mxu0 0
    %308 = vmatpush1.bf16.msra.mxu0 0
    %309 = vmatprep.subr.bf16.mxu0 0
    %310 = vmatpush1.bf16.msra.mxu0 0
    %311 = vmatprep.subr.bf16.mxu0 0
    %312 = vmatpush1.bf16.msra.mxu0 0
    %313 = vmatprep.mubr.bf16.mxu0 0
    %314 = vmatmul.mubr.bf16.gmra.mrb[0].mxu0 %v269
    %v315 = vpop.f32.mrb[0].mxu0
    %v316 = vadd.f32 0.0, %v315
    %v317 = vpop.f32.mrb[0].mxu0
    %v318 = vpop.f32.mrb[0].mxu0
    %v319 = vadd.f32 0.0, %v318
    %v320 = vpop.f32.mrb[0].mxu0
    %321 = vmatprep.mubr.bf16.mxu0 0
    %322 = vmatmul.mubr.bf16.gmra.mrb[0].mxu0 %v272
    %v323 = vpop.f32.mrb[0].mxu0
    %v324 = vadd.f32 0.0, %v323
    %v325 = vpop.f32.mrb[0].mxu0
    %v326 = vpop.f32.mrb[0].mxu0
    %v327 = vadd.f32 0.0, %v326
    %v328 = vpop.f32.mrb[0].mxu0
    %329 = vmatprep.mubr.bf16.mxu0 0
    %330 = vmatmul.mubr.bf16.gmra.mrb[0].mxu0 %v275
    %v331 = vpop.f32.mrb[0].mxu0
    %v332 = vadd.f32 0.0, %v331
    %v333 = vpop.f32.mrb[0].mxu0
    %v334 = vpop.f32.mrb[0].mxu0
    %v335 = vpop.f32.mrb[0].mxu0
    %336 = vdwg.mxu0
    %v337 = vld [vmem:[#allocation10] sm:$0xff]
    %v338 = vld [vmem:[#allocation10 + $0x8] sm:$0xff]
    %v339 = vld [vmem:[#allocation10 + $0x10] sm:$0xff]
    %v340 = vadd.f32 %v316, %v327
    %v341 = vadd.f32 %v340, %v337
    %v342 = vxor.u32 %v341, 2147483648
    %v343 = vmul.f32 %v342, 1.442695
    %v344 = vpow.pop %v343
    %v345 = vadd.f32 %v344, 1.0
    %v346 = vrcp.pop %v345
    %v347 = vmul.f32 1.0, %v346
    %v348 = vadd.f32 %v319, %v332
    %v349 = vadd.f32 %v348, %v338
    %v350 = vxor.u32 %v349, 2147483648
    %v351 = vmul.f32 %v350, 1.442695
    %v352 = vpow.pop %v351
    %v353 = vadd.f32 %v352, 1.0
    %v354 = vrcp.pop %v353
    %v355 = vmul.f32 1.0, %v354
    %v356 = vld [vmem:[#allocation8] sm:$0xf]
    %v357 = vmul.f32 %v355, %v247
    %v358 = vpack.c.bf16 %v357, %v357
    %v360 = vsel %vm267, %v356, 0
    %v363 = vsel %vm277, %v358, 0
    %365 = vmatprep.subr.bf16.mxu0 0
    %366 = vmatpush1.bf16.msra.mxu0 %v363
    %367 = vmatprep.subr.bf16.mxu0 0
    %368 = vmatpush1.bf16.msra.mxu0 0
    %369 = vmatprep.subr.bf16.mxu0 0
    %370 = vmatpush1.bf16.msra.mxu0 0
    %371 = vmatprep.subr.bf16.mxu0 0
    %372 = vmatpush1.bf16.msra.mxu0 0
    %373 = vmatprep.subr.bf16.mxu0 0
    %374 = vmatpush1.bf16.msra.mxu0 0
    %375 = vmatprep.subr.bf16.mxu0 0
    %376 = vmatpush1.bf16.msra.mxu0 0
    %377 = vmatprep.subr.bf16.mxu0 0
    %378 = vmatpush1.bf16.msra.mxu0 0
    %379 = vmatprep.subr.bf16.mxu0 0
    %380 = vmatpush1.bf16.msra.mxu0 0
    %381 = vmatprep.subr.bf16.mxu0 0
    %382 = vmatpush1.bf16.msra.mxu0 0
    %383 = vmatprep.subr.bf16.mxu0 0
    %384 = vmatpush1.bf16.msra.mxu0 0
    %385 = vmatprep.subr.bf16.mxu0 0
    %386 = vmatpush1.bf16.msra.mxu0 0
    %387 = vmatprep.subr.bf16.mxu0 0
    %388 = vmatpush1.bf16.msra.mxu0 0
    %389 = vmatprep.subr.bf16.mxu0 0
    %390 = vmatpush1.bf16.msra.mxu0 0
    %391 = vmatprep.subr.bf16.mxu0 0
    %392 = vmatpush1.bf16.msra.mxu0 0
    %393 = vmatprep.subr.bf16.mxu0 0
    %394 = vmatpush1.bf16.msra.mxu0 0
    %395 = vmatprep.subr.bf16.mxu0 0
    %396 = vmatpush1.bf16.msra.mxu0 0
    %397 = vmatprep.mubr.bf16.mxu0 0
    %398 = vmatmul.mubr.bf16.gmra.mrb[0].mxu0 %v360
    %v399 = vpop.f32.mrb[0].mxu0
    %v400 = vadd.f32 0.0, %v399
    %v401 = vpop.f32.mrb[0].mxu0
    %v402 = vpop.f32.mrb[0].mxu0
    %v403 = vpop.f32.mrb[0].mxu0
    %404 = vdwg.mxu0
    %v405 = vadd.f32 %v324, %v400
    %v406 = vadd.f32 %v405, %v339
    %v407 = vtanh.pop %v406
    %v408 = vsub.f32 1.0, %v347
    %v409 = vmul.f32 %v408, %v247
    %v410 = vmul.f32 %v347, %v407
    %v411 = vadd.f32 %v409, %v410
    %v412 = vpack.c.bf16 %v411, %v411
    %v413 = vmul.f32 %v242, %v245
    %v414 = vmul.f32 %v243, %v246
    %v415 = vpack.c.bf16 %v414, %v413
    %v417 = vsel %vm233, %v244, 0
    %419 = vmatprep.subr.bf16.mxu0 0
    %420 = vmatpush1.bf16.msra.mxu0 %v415
    %421 = vmatprep.subr.bf16.mxu0 0
    %422 = vmatpush1.bf16.msra.mxu0 0
    %423 = vmatprep.subr.bf16.mxu0 0
    %424 = vmatpush1.bf16.msra.mxu0 0
    %425 = vmatprep.subr.bf16.mxu0 0
    %426 = vmatpush1.bf16.msra.mxu0 0
    %427 = vmatprep.subr.bf16.mxu0 0
    %428 = vmatpush1.bf16.msra.mxu0 0
    %429 = vmatprep.subr.bf16.mxu0 0
    %430 = vmatpush1.bf16.msra.mxu0 0
    %431 = vmatprep.subr.bf16.mxu0 0
    %432 = vmatpush1.bf16.msra.mxu0 0
    %433 = vmatprep.subr.bf16.mxu0 0
    %434 = vmatpush1.bf16.msra.mxu0 0
    %435 = vmatprep.subr.bf16.mxu0 0
    %436 = vmatpush1.bf16.msra.mxu0 0
    %437 = vmatprep.subr.bf16.mxu0 0
    %438 = vmatpush1.bf16.msra.mxu0 0
    %439 = vmatprep.subr.bf16.mxu0 0
    %440 = vmatpush1.bf16.msra.mxu0 0
    %441 = vmatprep.subr.bf16.mxu0 0
    %442 = vmatpush1.bf16.msra.mxu0 0
    %443 = vmatprep.subr.bf16.mxu0 0
    %444 = vmatpush1.bf16.msra.mxu0 0
    %445 = vmatprep.subr.bf16.mxu0 0
    %446 = vmatpush1.bf16.msra.mxu0 0
    %447 = vmatprep.subr.bf16.mxu0 0
    %448 = vmatpush1.bf16.msra.mxu0 0
    %449 = vmatprep.subr.bf16.mxu0 0
    %450 = vmatpush1.bf16.msra.mxu0 0
    %451 = vmatprep.mubr.bf16.mxu0 0
    %452 = vmatmul.mubr.bf16.gmra.mrb[0].mxu0 %v417
    %v453 = vpop.f32.mrb[0].mxu0
    %v454 = vadd.f32 %v413, %v453
    %v455 = vpop.f32.mrb[0].mxu0
    %v456 = vpop.f32.mrb[0].mxu0
    %v457 = vadd.f32 %v414, %v456
    %v458 = vpop.f32.mrb[0].mxu0
    %459 = vdwg.mxu0
    %v460 = vmul.f32 %v242, %v454
    %v461 = vmul.f32 %v243, %v457
    %v462 = vpack.c.bf16 %v461, %v460
    %v464 = vsel %vm267, %v462, 0
    %v467 = vsel %vm277, %v412, 0
    %469 = vmatprep.subr.bf16.mxu0 0
    %470 = vmatpush1.bf16.msra.mxu0 %v467
    %471 = vmatprep.subr.bf16.mxu0 0
    %472 = vmatpush1.bf16.msra.mxu0 0
    %473 = vmatprep.subr.bf16.mxu0 0
    %474 = vmatpush1.bf16.msra.mxu0 0
    %475 = vmatprep.subr.bf16.mxu0 0
    %476 = vmatpush1.bf16.msra.mxu0 0
    %477 = vmatprep.subr.bf16.mxu0 0
    %478 = vmatpush1.bf16.msra.mxu0 0
    %479 = vmatprep.subr.bf16.mxu0 0
    %480 = vmatpush1.bf16.msra.mxu0 0
    %481 = vmatprep.subr.bf16.mxu0 0
    %482 = vmatpush1.bf16.msra.mxu0 0
    %483 = vmatprep.subr.bf16.mxu0 0
    %484 = vmatpush1.bf16.msra.mxu0 0
    %485 = vmatprep.subr.bf16.mxu0 0
    %486 = vmatpush1.bf16.msra.mxu0 0
    %487 = vmatprep.subr.bf16.mxu0 0
    %488 = vmatpush1.bf16.msra.mxu0 0
    %489 = vmatprep.subr.bf16.mxu0 0
    %490 = vmatpush1.bf16.msra.mxu0 0
    %491 = vmatprep.subr.bf16.mxu0 0
    %492 = vmatpush1.bf16.msra.mxu0 0
    %493 = vmatprep.subr.bf16.mxu0 0
    %494 = vmatpush1.bf16.msra.mxu0 0
    %495 = vmatprep.subr.bf16.mxu0 0
    %496 = vmatpush1.bf16.msra.mxu0 0
    %497 = vmatprep.subr.bf16.mxu0 0
    %498 = vmatpush1.bf16.msra.mxu0 0
    %499 = vmatprep.subr.bf16.mxu0 0
    %500 = vmatpush1.bf16.msra.mxu0 0
    %501 = vmatprep.mubr.bf16.mxu0 0
    %502 = vmatmul.mubr.bf16.gmra.mrb[0].mxu0 %v464
    %v503 = vpop.f32.mrb[0].mxu0
    %v504 = vadd.f32 0.0, %v503
    %v505 = vpop.f32.mrb[0].mxu0
    %v506 = vpop.f32.mrb[0].mxu0
    %v507 = vadd.f32 0.0, %v506
    %v508 = vpop.f32.mrb[0].mxu0
    %509 = vdwg.mxu0
    %v510 = vmax.f32 %v504, 0.0
    %v511 = vmax.f32 %v507, 0.0
    %v512 = vld [vmem:[#allocation17] sm:$0xff]
    %v513 = vld [vmem:[#allocation17 + $0x8] sm:$0xff]
    %v514 = vld [vmem:[#allocation17 + $0x10] sm:$0xff]
    %v515 = vld [vmem:[#allocation17 + $0x18] sm:$0xff]
    %v516 = vpack.c.bf16 %v513, %v512
    %v517 = vpack.c.bf16 %v515, %v514
    %v518 = vld [vmem:[#allocation13] sm:$0xf]
    %v519 = vld [vmem:[#allocation13 + $0x4] sm:$0xf]
    %v520 = vld [vmem:[#allocation13 + $0x8] sm:$0xf]
    %v521 = vld [vmem:[#allocation13 + $0xc] sm:$0xf]
    %v522 = vld [vmem:[#allocation13 + $0x10] sm:$0xf]
    %v523 = vld [vmem:[#allocation13 + $0x14] sm:$0xf]
    %v524 = vld [vmem:[#allocation13 + $0x18] sm:$0xf]
    %v525 = vld [vmem:[#allocation13 + $0x1c] sm:$0xf]
    %v526 = vld [vmem:[#allocation13 + $0x20] sm:$0xf]
    %v527 = vld [vmem:[#allocation13 + $0x24] sm:$0xf]
    %v528 = vld [vmem:[#allocation13 + $0x28] sm:$0xf]
    %v529 = vld [vmem:[#allocation13 + $0x2c] sm:$0xf]
    %v530 = vld [vmem:[#allocation13 + $0x30] sm:$0xf]
    %v531 = vld [vmem:[#allocation13 + $0x34] sm:$0xf]
    %v532 = vld [vmem:[#allocation13 + $0x38] sm:$0xf]
    %v533 = vld [vmem:[#allocation13 + $0x3c] sm:$0xf]
    %v534 = vld [vmem:[#allocation13 + $0x40] sm:$0xf]
    %v535 = vld [vmem:[#allocation13 + $0x44] sm:$0xf]
    %v536 = vld [vmem:[#allocation13 + $0x48] sm:$0xf]
    %v537 = vld [vmem:[#allocation13 + $0x4c] sm:$0xf]
    %v558 = vunpack.c.l.b16 %v518
    %v559 = vunpack.c.l.b16 %v519
    %v560 = vunpack.c.l.b16 %v520
    %v561 = vunpack.c.l.b16 %v521
    %v562 = vunpack.c.l.b16 %v522
    %v563 = vunpack.c.l.b16 %v523
    %v564 = vunpack.c.l.b16 %v524
    %v565 = vunpack.c.l.b16 %v525
    %v566 = vunpack.c.l.b16 %v526
    %v567 = vunpack.c.l.b16 %v527
    %v568 = vunpack.c.l.b16 %v528
    %v569 = vunpack.c.l.b16 %v529
    %v570 = vunpack.c.l.b16 %v530
    %v571 = vunpack.c.l.b16 %v531
    %v572 = vunpack.c.l.b16 %v532
    %v573 = vunpack.c.l.b16 %v533
    %v574 = vunpack.c.l.b16 %v534
    %v575 = vunpack.c.l.b16 %v535
    %v576 = vunpack.c.l.b16 %v536
    %v577 = vunpack.c.l.b16 %v537
    %v578 = vpack.c.b16 %v559, %v558
    %v579 = vpack.c.b16 %v561, %v560
    %v580 = vpack.c.b16 %v563, %v562
    %v581 = vpack.c.b16 %v565, %v564
    %v582 = vpack.c.b16 %v567, %v566
    %v583 = vpack.c.b16 %v569, %v568
    %v584 = vpack.c.b16 %v571, %v570
    %v585 = vpack.c.b16 %v573, %v572
    %v586 = vpack.c.b16 %v575, %v574
    %v587 = vpack.c.b16 %v577, %v576
    %vm588 = vcmask 261120
    %v590 = vsel %vm588, %v578, 0
    %v593 = vsel %vm588, %v579, 0
    %v596 = vsel %vm588, %v580, 0
    %v599 = vsel %vm588, %v581, 0
    %v602 = vsel %vm588, %v582, 0
    %v605 = vsel %vm588, %v583, 0
    %v608 = vsel %vm588, %v584, 0
    %v611 = vsel %vm588, %v585, 0
    %v614 = vsel %vm588, %v586, 0
    %v617 = vsel %vm588, %v587, 0
    %619 = vmatprep.subr.bf16.mxu0 0
    %620 = vmatpush1.bf16.msra.mxu0 %v516
    %621 = vmatprep.subr.bf16.mxu0 0
    %622 = vmatpush1.bf16.msra.mxu0 %v517
    %623 = vmatprep.subr.bf16.mxu0 0
    %624 = vmatpush1.bf16.msra.mxu0 0
    %625 = vmatprep.subr.bf16.mxu0 0
    %626 = vmatpush1.bf16.msra.mxu0 0
    %627 = vmatprep.subr.bf16.mxu0 0
    %628 = vmatpush1.bf16.msra.mxu0 0
    %629 = vmatprep.subr.bf16.mxu0 0
    %630 = vmatpush1.bf16.msra.mxu0 0
    %631 = vmatprep.subr.bf16.mxu0 0
    %632 = vmatpush1.bf16.msra.mxu0 0
    %633 = vmatprep.subr.bf16.mxu0 0
    %634 = vmatpush1.bf16.msra.mxu0 0
    %635 = vmatprep.subr.bf16.mxu0 0
    %636 = vmatpush1.bf16.msra.mxu0 0
    %637 = vmatprep.subr.bf16.mxu0 0
    %638 = vmatpush1.bf16.msra.mxu0 0
    %639 = vmatprep.subr.bf16.mxu0 0
    %640 = vmatpush1.bf16.msra.mxu0 0
    %641 = vmatprep.subr.bf16.mxu0 0
    %642 = vmatpush1.bf16.msra.mxu0 0
    %643 = vmatprep.subr.bf16.mxu0 0
    %644 = vmatpush1.bf16.msra.mxu0 0
    %645 = vmatprep.subr.bf16.mxu0 0
    %646 = vmatpush1.bf16.msra.mxu0 0
    %647 = vmatprep.subr.bf16.mxu0 0
    %648 = vmatpush1.bf16.msra.mxu0 0
    %649 = vmatprep.subr.bf16.mxu0 0
    %650 = vmatpush1.bf16.msra.mxu0 0
    %651 = vmatprep.mubr.bf16.mxu0 0
    %652 = vmatmul.mubr.bf16.gmra.mrb[0].mxu0 %v590
    %v653 = vpop.f32.mrb[0].mxu0
    %v654 = vadd.f32 0.0, %v653
    %v655 = vpop.f32.mrb[0].mxu0
    %v656 = vpop.f32.mrb[0].mxu0
    %v657 = vadd.f32 0.0, %v656
    %v658 = vpop.f32.mrb[0].mxu0
    %659 = vmatprep.mubr.bf16.mxu0 0
    %660 = vmatmul.mubr.bf16.gmra.mrb[0].mxu0 %v593
    %v661 = vpop.f32.mrb[0].mxu0
    %v662 = vadd.f32 0.0, %v661
    %v663 = vpop.f32.mrb[0].mxu0
    %v664 = vpop.f32.mrb[0].mxu0
    %v665 = vadd.f32 0.0, %v664
    %v666 = vpop.f32.mrb[0].mxu0
    %667 = vmatprep.mubr.bf16.mxu0 0
    %668 = vmatmul.mubr.bf16.gmra.mrb[0].mxu0 %v596
    %v669 = vpop.f32.mrb[0].mxu0
    %v670 = vadd.f32 0.0, %v669
    %v671 = vpop.f32.mrb[0].mxu0
    %v672 = vpop.f32.mrb[0].mxu0
    %v673 = vadd.f32 0.0, %v672
    %v674 = vpop.f32.mrb[0].mxu0
    %675 = vmatprep.mubr.bf16.mxu0 0
    %676 = vmatmul.mubr.bf16.gmra.mrb[0].mxu0 %v599
    %v677 = vpop.f32.mrb[0].mxu0
    %v678 = vadd.f32 0.0, %v677
    %v679 = vpop.f32.mrb[0].mxu0
    %v680 = vpop.f32.mrb[0].mxu0
    %v681 = vadd.f32 0.0, %v680
    %v682 = vpop.f32.mrb[0].mxu0
    %683 = vmatprep.mubr.bf16.mxu0 0
    %684 = vmatmul.mubr.bf16.gmra.mrb[0].mxu0 %v602
    %v685 = vpop.f32.mrb[0].mxu0
    %v686 = vadd.f32 0.0, %v685
    %v687 = vpop.f32.mrb[0].mxu0
    %v688 = vpop.f32.mrb[0].mxu0
    %v689 = vadd.f32 0.0, %v688
    %v690 = vpop.f32.mrb[0].mxu0
    %691 = vmatprep.mubr.bf16.mxu0 0
    %692 = vmatmul.mubr.bf16.gmra.mrb[0].mxu0 %v605
    %v693 = vpop.f32.mrb[0].mxu0
    %v694 = vadd.f32 0.0, %v693
    %v695 = vpop.f32.mrb[0].mxu0
    %v696 = vpop.f32.mrb[0].mxu0
    %v697 = vadd.f32 0.0, %v696
    %v698 = vpop.f32.mrb[0].mxu0
    %699 = vmatprep.mubr.bf16.mxu0 0
    %700 = vmatmul.mubr.bf16.gmra.mrb[0].mxu0 %v608
    %v701 = vpop.f32.mrb[0].mxu0
    %v702 = vadd.f32 0.0, %v701
    %v703 = vpop.f32.mrb[0].mxu0
    %v704 = vpop.f32.mrb[0].mxu0
    %v705 = vadd.f32 0.0, %v704
    %v706 = vpop.f32.mrb[0].mxu0
    %707 = vmatprep.mubr.bf16.mxu0 0
    %708 = vmatmul.mubr.bf16.gmra.mrb[0].mxu0 %v611
    %v709 = vpop.f32.mrb[0].mxu0
    %v710 = vadd.f32 0.0, %v709
    %v711 = vpop.f32.mrb[0].mxu0
    %v712 = vpop.f32.mrb[0].mxu0
    %v713 = vadd.f32 0.0, %v712
    %v714 = vpop.f32.mrb[0].mxu0
    %715 = vmatprep.mubr.bf16.mxu0 0
    %716 = vmatmul.mubr.bf16.gmra.mrb[0].mxu0 %v614
    %v717 = vpop.f32.mrb[0].mxu0
    %v718 = vadd.f32 0.0, %v717
    %v719 = vpop.f32.mrb[0].mxu0
    %v720 = vpop.f32.mrb[0].mxu0
    %v721 = vadd.f32 0.0, %v720
    %v722 = vpop.f32.mrb[0].mxu0
    %723 = vmatprep.mubr.bf16.mxu0 0
    %724 = vmatmul.mubr.bf16.gmra.mrb[0].mxu0 %v617
    %v725 = vpop.f32.mrb[0].mxu0
    %v726 = vadd.f32 0.0, %v725
    %v727 = vpop.f32.mrb[0].mxu0
    %v728 = vpop.f32.mrb[0].mxu0
    %v729 = vadd.f32 0.0, %v728
    %v730 = vpop.f32.mrb[0].mxu0
    %731 = vdwg.mxu0
    %v732 = vld [vmem:[#allocation16] sm:$0xff]
    %v733 = vld [vmem:[#allocation16 + $0x8] sm:$0xff]
    %v734 = vld [vmem:[#allocation16 + $0x10] sm:$0xff]
    %v735 = vld [vmem:[#allocation16 + $0x18] sm:$0xff]
    %v736 = vld [vmem:[#allocation16 + $0x20] sm:$0xff]
    %v737 = vld [vmem:[#allocation16 + $0x28] sm:$0xff]
    %v738 = vld [vmem:[#allocation16 + $0x30] sm:$0xff]
    %v739 = vld [vmem:[#allocation16 + $0x38] sm:$0xff]
    %v740 = vld [vmem:[#allocation16 + $0x40] sm:$0xff]
    %v741 = vld [vmem:[#allocation16 + $0x48] sm:$0xff]
    %v742 = vld [vmem:[#allocation16 + $0x50] sm:$0xff]
    %v743 = vld [vmem:[#allocation16 + $0x58] sm:$0xff]
    %v744 = vadd.f32 %v654, %v702
    %v745 = vadd.f32 %v657, %v705
    %v746 = vadd.f32 %v662, %v710
    %v747 = vadd.f32 %v665, %v713
    %v748 = vadd.f32 %v744, %v732
    %v749 = vadd.f32 %v745, %v733
    %v750 = vadd.f32 %v746, %v734
    %v751 = vadd.f32 %v747, %v735
    %v752 = vxor.u32 %v748, 2147483648
    %v753 = vxor.u32 %v749, 2147483648
    %v754 = vxor.u32 %v750, 2147483648
    %v755 = vxor.u32 %v751, 2147483648
    %v756 = vmul.f32 %v752, 1.442695
    %v757 = vpow.pop %v756
    %v758 = vmul.f32 %v753, 1.442695
    %v759 = vpow.pop %v758
    %v760 = vmul.f32 %v754, 1.442695
    %v761 = vpow.pop %v760
    %v762 = vmul.f32 %v755, 1.442695
    %v763 = vpow.pop %v762
    %v764 = vadd.f32 %v757, 1.0
    %v765 = vadd.f32 %v759, 1.0
    %v766 = vadd.f32 %v761, 1.0
    %v767 = vadd.f32 %v763, 1.0
    %v768 = vrcp.pop %v764
    %v769 = vmul.f32 1.0, %v768
    %v770 = vrcp.pop %v765
    %v771 = vmul.f32 1.0, %v770
    %v772 = vrcp.pop %v766
    %v773 = vmul.f32 1.0, %v772
    %v774 = vrcp.pop %v767
    %v775 = vmul.f32 1.0, %v774
    %v776 = vadd.f32 %v670, %v718
    %v777 = vadd.f32 %v673, %v721
    %v778 = vadd.f32 %v678, %v726
    %v779 = vadd.f32 %v681, %v729
    %v780 = vadd.f32 %v776, %v736
    %v781 = vadd.f32 %v777, %v737
    %v782 = vadd.f32 %v778, %v738
    %v783 = vadd.f32 %v779, %v739
    %v784 = vxor.u32 %v780, 2147483648
    %v785 = vxor.u32 %v781, 2147483648
    %v786 = vxor.u32 %v782, 2147483648
    %v787 = vxor.u32 %v783, 2147483648
    %v788 = vmul.f32 %v784, 1.442695
    %v789 = vpow.pop %v788
    %v790 = vmul.f32 %v785, 1.442695
    %v791 = vpow.pop %v790
    %v792 = vmul.f32 %v786, 1.442695
    %v793 = vpow.pop %v792
    %v794 = vmul.f32 %v787, 1.442695
    %v795 = vpow.pop %v794
    %v796 = vadd.f32 %v789, 1.0
    %v797 = vadd.f32 %v791, 1.0
    %v798 = vadd.f32 %v793, 1.0
    %v799 = vadd.f32 %v795, 1.0
    %v800 = vrcp.pop %v796
    %v801 = vmul.f32 1.0, %v800
    %v802 = vrcp.pop %v797
    %v803 = vmul.f32 1.0, %v802
    %v804 = vrcp.pop %v798
    %v805 = vmul.f32 1.0, %v804
    %v806 = vrcp.pop %v799
    %v807 = vmul.f32 1.0, %v806
    %v808 = vld [vmem:[#allocation14] sm:$0xf]
    %v809 = vld [vmem:[#allocation14 + $0x4] sm:$0xf]
    %v810 = vld [vmem:[#allocation14 + $0x8] sm:$0xf]
    %v811 = vld [vmem:[#allocation14 + $0xc] sm:$0xf]
    %v812 = vmul.f32 %v801, %v512
    %v813 = vmul.f32 %v803, %v513
    %v814 = vmul.f32 %v805, %v514
    %v815 = vmul.f32 %v807, %v515
    %v816 = vpack.c.bf16 %v813, %v812
    %v817 = vpack.c.bf16 %v815, %v814
    %v822 = vunpack.c.l.b16 %v808
    %v823 = vunpack.c.l.b16 %v809
    %v824 = vunpack.c.l.b16 %v810
    %v825 = vunpack.c.l.b16 %v811
    %v826 = vpack.c.b16 %v823, %v822
    %v827 = vpack.c.b16 %v825, %v824
    %v829 = vsel %vm588, %v826, 0
    %v832 = vsel %vm588, %v827, 0
    %834 = vmatprep.subr.bf16.mxu0 0
    %835 = vmatpush1.bf16.msra.mxu0 %v816
    %836 = vmatprep.subr.bf16.mxu0 0
    %837 = vmatpush1.bf16.msra.mxu0 %v817
    %838 = vmatprep.subr.bf16.mxu0 0
    %839 = vmatpush1.bf16.msra.mxu0 0
    %840 = vmatprep.subr.bf16.mxu0 0
    %841 = vmatpush1.bf16.msra.mxu0 0
    %842 = vmatprep.subr.bf16.mxu0 0
    %843 = vmatpush1.bf16.msra.mxu0 0
    %844 = vmatprep.subr.bf16.mxu0 0
    %845 = vmatpush1.bf16.msra.mxu0 0
    %846 = vmatprep.subr.bf16.mxu0 0
    %847 = vmatpush1.bf16.msra.mxu0 0
    %848 = vmatprep.subr.bf16.mxu0 0
    %849 = vmatpush1.bf16.msra.mxu0 0
    %850 = vmatprep.subr.bf16.mxu0 0
    %851 = vmatpush1.bf16.msra.mxu0 0
    %852 = vmatprep.subr.bf16.mxu0 0
    %853 = vmatpush1.bf16.msra.mxu0 0
    %854 = vmatprep.subr.bf16.mxu0 0
    %855 = vmatpush1.bf16.msra.mxu0 0
    %856 = vmatprep.subr.bf16.mxu0 0
    %857 = vmatpush1.bf16.msra.mxu0 0
    %858 = vmatprep.subr.bf16.mxu0 0
    %859 = vmatpush1.bf16.msra.mxu0 0
    %860 = vmatprep.subr.bf16.mxu0 0
    %861 = vmatpush1.bf16.msra.mxu0 0
    %862 = vmatprep.subr.bf16.mxu0 0
    %863 = vmatpush1.bf16.msra.mxu0 0
    %864 = vmatprep.subr.bf16.mxu0 0
    %865 = vmatpush1.bf16.msra.mxu0 0
    %866 = vmatprep.mubr.bf16.mxu0 0
    %867 = vmatmul.mubr.bf16.gmra.mrb[0].mxu0 %v829
    %v868 = vpop.f32.mrb[0].mxu0
    %v869 = vadd.f32 0.0, %v868
    %v870 = vpop.f32.mrb[0].mxu0
    %v871 = vpop.f32.mrb[0].mxu0
    %v872 = vadd.f32 0.0, %v871
    %v873 = vpop.f32.mrb[0].mxu0
    %874 = vmatprep.mubr.bf16.mxu0 0
    %875 = vmatmul.mubr.bf16.gmra.mrb[0].mxu0 %v832
    %v876 = vpop.f32.mrb[0].mxu0
    %v877 = vadd.f32 0.0, %v876
    %v878 = vpop.f32.mrb[0].mxu0
    %v879 = vpop.f32.mrb[0].mxu0
    %v880 = vadd.f32 0.0, %v879
    %v881 = vpop.f32.mrb[0].mxu0
    %882 = vdwg.mxu0
    %v883 = vadd.f32 %v686, %v869
    %v884 = vadd.f32 %v689, %v872
    %v885 = vadd.f32 %v694, %v877
    %v886 = vadd.f32 %v697, %v880
    %v887 = vadd.f32 %v883, %v740
    %v888 = vadd.f32 %v884, %v741
    %v889 = vadd.f32 %v885, %v742
    %v890 = vadd.f32 %v886, %v743
    %v891 = vtanh.pop %v887
    %v892 = vtanh.pop %v888
    %v893 = vtanh.pop %v889
    %v894 = vtanh.pop %v890
    %v895 = vsub.f32 1.0, %v769
    %v896 = vsub.f32 1.0, %v771
    %v897 = vsub.f32 1.0, %v773
    %v898 = vsub.f32 1.0, %v775
    %v899 = vmul.f32 %v895, %v512
    %v900 = vmul.f32 %v896, %v513
    %v901 = vmul.f32 %v897, %v514
    %v902 = vmul.f32 %v898, %v515
    %v903 = vmul.f32 %v769, %v891
    %v904 = vmul.f32 %v771, %v892
    %v905 = vmul.f32 %v773, %v893
    %v906 = vmul.f32 %v775, %v894
    %v907 = vadd.f32 %v899, %v903
    %v908 = vadd.f32 %v900, %v904
    %v909 = vadd.f32 %v901, %v905
    %v910 = vadd.f32 %v902, %v906
    %v911 = vpack.c.bf16 %v908, %v907
    %v912 = vpack.c.bf16 %v910, %v909
    %v913 = vmul.f32 %v242, %v510
    %v914 = vmul.f32 %v243, %v511
    %v915 = vpack.c.bf16 %v914, %v913
    %916 = vmatprep.subr.bf16.mxu0 0
    %917 = vmatpush1.bf16.msra.mxu0 %v915
    %918 = vmatprep.subr.bf16.mxu0 0
    %919 = vmatpush1.bf16.msra.mxu0 0
    %920 = vmatprep.subr.bf16.mxu0 0
    %921 = vmatpush1.bf16.msra.mxu0 0
    %922 = vmatprep.subr.bf16.mxu0 0
    %923 = vmatpush1.bf16.msra.mxu0 0
    %924 = vmatprep.subr.bf16.mxu0 0
    %925 = vmatpush1.bf16.msra.mxu0 0
    %926 = vmatprep.subr.bf16.mxu0 0
    %927 = vmatpush1.bf16.msra.mxu0 0
    %928 = vmatprep.subr.bf16.mxu0 0
    %929 = vmatpush1.bf16.msra.mxu0 0
    %930 = vmatprep.subr.bf16.mxu0 0
    %931 = vmatpush1.bf16.msra.mxu0 0
    %932 = vmatprep.subr.bf16.mxu0 0
    %933 = vmatpush1.bf16.msra.mxu0 0
    %934 = vmatprep.subr.bf16.mxu0 0
    %935 = vmatpush1.bf16.msra.mxu0 0
    %936 = vmatprep.subr.bf16.mxu0 0
    %937 = vmatpush1.bf16.msra.mxu0 0
    %938 = vmatprep.subr.bf16.mxu0 0
    %939 = vmatpush1.bf16.msra.mxu0 0
    %940 = vmatprep.subr.bf16.mxu0 0
    %941 = vmatpush1.bf16.msra.mxu0 0
    %942 = vmatprep.subr.bf16.mxu0 0
    %943 = vmatpush1.bf16.msra.mxu0 0
    %944 = vmatprep.subr.bf16.mxu0 0
    %945 = vmatpush1.bf16.msra.mxu0 0
    %946 = vmatprep.subr.bf16.mxu0 0
    %947 = vmatpush1.bf16.msra.mxu0 0
    %948 = vmatprep.mubr.bf16.mxu0 0
    %949 = vmatmul.mubr.bf16.gmra.mrb[0].mxu0 %v417
    %v950 = vpop.f32.mrb[0].mxu0
    %v951 = vadd.f32 %v913, %v950
    %v952 = vpop.f32.mrb[0].mxu0
    %v953 = vpop.f32.mrb[0].mxu0
    %v954 = vadd.f32 %v914, %v953
    %v955 = vpop.f32.mrb[0].mxu0
    %956 = vdwg.mxu0
    %v957 = vmul.f32 %v242, %v951
    %v958 = vmul.f32 %v243, %v954
    %v959 = vpack.c.bf16 %v958, %v957
    %v961 = vsel %vm588, %v959, 0
    %963 = vmatprep.subr.bf16.mxu0 0
    %964 = vmatpush1.bf16.msra.mxu0 %v911
    %965 = vmatprep.subr.bf16.mxu0 0
    %966 = vmatpush1.bf16.msra.mxu0 %v912
    %967 = vmatprep.subr.bf16.mxu0 0
    %968 = vmatpush1.bf16.msra.mxu0 0
    %969 = vmatprep.subr.bf16.mxu0 0
    %970 = vmatpush1.bf16.msra.mxu0 0
    %971 = vmatprep.subr.bf16.mxu0 0
    %972 = vmatpush1.bf16.msra.mxu0 0
    %973 = vmatprep.subr.bf16.mxu0 0
    %974 = vmatpush1.bf16.msra.mxu0 0
    %975 = vmatprep.subr.bf16.mxu0 0
    %976 = vmatpush1.bf16.msra.mxu0 0
    %977 = vmatprep.subr.bf16.mxu0 0
    %978 = vmatpush1.bf16.msra.mxu0 0
    %979 = vmatprep.subr.bf16.mxu0 0
    %980 = vmatpush1.bf16.msra.mxu0 0
    %981 = vmatprep.subr.bf16.mxu0 0
    %982 = vmatpush1.bf16.msra.mxu0 0
    %983 = vmatprep.subr.bf16.mxu0 0
    %984 = vmatpush1.bf16.msra.mxu0 0
    %985 = vmatprep.subr.bf16.mxu0 0
    %986 = vmatpush1.bf16.msra.mxu0 0
    %987 = vmatprep.subr.bf16.mxu0 0
    %988 = vmatpush1.bf16.msra.mxu0 0
    %989 = vmatprep.subr.bf16.mxu0 0
    %990 = vmatpush1.bf16.msra.mxu0 0
    %991 = vmatprep.subr.bf16.mxu0 0
    %992 = vmatpush1.bf16.msra.mxu0 0
    %993 = vmatprep.subr.bf16.mxu0 0
    %994 = vmatpush1.bf16.msra.mxu0 0
    %995 = vmatprep.mubr.bf16.mxu0 0
    %996 = vmatmul.mubr.bf16.gmra.mrb[0].mxu0 %v961
    %v997 = vpop.f32.mrb[0].mxu0
    %v998 = vadd.f32 0.0, %v997
    %v999 = vpop.f32.mrb[0].mxu0
    %v1000 = vpop.f32.mrb[0].mxu0
    %v1001 = vadd.f32 0.0, %v1000
    %v1002 = vpop.f32.mrb[0].mxu0
    %1003 = vdwg.mxu0
    %v1004 = vmax.f32 %v998, 0.0
    %v1005 = vmax.f32 %v1001, 0.0
    %v1006 = vpack.c.bf16 %v1005, %v1004
    %v1007 = vld [vmem:[#allocation19] sm:$0xf]
    %v1008 = vld [vmem:[#allocation19 + $0x4] sm:$0xf]
    %v1009 = vld [vmem:[#allocation19 + $0x8] sm:$0xf]
    %v1010 = vld [vmem:[#allocation19 + $0xc] sm:$0xf]
    %v1011 = vld [vmem:[#allocation20] sm:$0x1]
    %v1013 = vlaneseq
    %v1014 = vshrl.u32 %v1013, 7
    %v1015 = vsub.s32 0, %v1014
    %v1016 = vrot.slane %v1011, %v1015
    %v1022 = vunpack.c.l.b16 %v1007
    %v1023 = vunpack.c.l.b16 %v1008
    %v1024 = vunpack.c.l.b16 %v1009
    %v1025 = vunpack.c.l.b16 %v1010
    %v1026 = vpack.c.b16 %v1023, %v1022
    %v1027 = vpack.c.b16 %v1025, %v1024
    %v1031 = vsel %vm588, %v1006, 0
    %1033 = vmatprep.subr.bf16.mxu0 0
    %1034 = vmatpush1.bf16.msra.mxu0 %v1026
    %1035 = vmatprep.subr.bf16.mxu0 0
    %1036 = vmatpush1.bf16.msra.mxu0 %v1027
    %1037 = vmatprep.subr.bf16.mxu0 0
    %1038 = vmatpush1.bf16.msra.mxu0 0
    %1039 = vmatprep.subr.bf16.mxu0 0
    %1040 = vmatpush1.bf16.msra.mxu0 0
    %1041 = vmatprep.subr.bf16.mxu0 0
    %1042 = vmatpush1.bf16.msra.mxu0 0
    %1043 = vmatprep.subr.bf16.mxu0 0
    %1044 = vmatpush1.bf16.msra.mxu0 0
    %1045 = vmatprep.subr.bf16.mxu0 0
    %1046 = vmatpush1.bf16.msra.mxu0 0
    %1047 = vmatprep.subr.bf16.mxu0 0
    %1048 = vmatpush1.bf16.msra.mxu0 0
    %1049 = vmatprep.subr.bf16.mxu0 0
    %1050 = vmatpush1.bf16.msra.mxu0 0
    %1051 = vmatprep.subr.bf16.mxu0 0
    %1052 = vmatpush1.bf16.msra.mxu0 0
    %1053 = vmatprep.subr.bf16.mxu0 0
    %1054 = vmatpush1.bf16.msra.mxu0 0
    %1055 = vmatprep.subr.bf16.mxu0 0
    %1056 = vmatpush1.bf16.msra.mxu0 0
    %1057 = vmatprep.subr.bf16.mxu0 0
    %1058 = vmatpush1.bf16.msra.mxu0 0
    %1059 = vmatprep.subr.bf16.mxu0 0
    %1060 = vmatpush1.bf16.msra.mxu0 0
    %1061 = vmatprep.subr.bf16.mxu0 0
    %1062 = vmatpush1.bf16.msra.mxu0 0
    %1063 = vmatprep.subr.bf16.mxu0 0
    %1064 = vmatpush1.bf16.msra.mxu0 0
    %1065 = vmatprep.mubr.bf16.mxu0 0
    %1066 = vmatmul.mubr.bf16.gmra.mrb[0].mxu0 %v1031
    %v1067 = vpop.f32.mrb[0].mxu0
    %v1068 = vadd.f32 %v1016, %v1067
    %v1069 = vpop.f32.mrb[0].mxu0
    %v1070 = vpop.f32.mrb[0].mxu0
    %v1071 = vadd.f32 %v1016, %v1070
    %v1072 = vpop.f32.mrb[0].mxu0
    %1073 = vdwg.mxu0
    %v1074 = vmax.f32 %v1068, 0.0
    %v1075 = vmax.f32 %v1071, 0.0
    %v1076 = vpack.c.bf16 %v1075, %v1074
    %v1077 = vld [vmem:[#allocation22] sm:$0xf]
    %v1078 = vld [vmem:[#allocation22 + $0x4] sm:$0xf]
    %v1079 = vld [vmem:[#allocation23] sm:$0x1]
    %v1081 = vlaneseq
    %v1082 = vshrl.u32 %v1081, 7
    %v1083 = vsub.s32 0, %v1082
    %v1084 = vrot.slane %v1079, %v1083
    %v1088 = vunpack.c.l.b16 %v1077
    %v1089 = vunpack.c.l.b16 %v1078
    %v1090 = vpack.c.b16 %v1089, %v1088
    %v1093 = vsel %vm233, %v1076, 0
    %1095 = vmatprep.subr.bf16.mxu0 0
    %1096 = vmatpush1.bf16.msra.mxu0 %v1090
    %1097 = vmatprep.subr.bf16.mxu0 0
    %1098 = vmatpush1.bf16.msra.mxu0 0
    %1099 = vmatprep.subr.bf16.mxu0 0
    %1100 = vmatpush1.bf16.msra.mxu0 0
    %1101 = vmatprep.subr.bf16.mxu0 0
    %1102 = vmatpush1.bf16.msra.mxu0 0
    %1103 = vmatprep.subr.bf16.mxu0 0
    %1104 = vmatpush1.bf16.msra.mxu0 0
    %1105 = vmatprep.subr.bf16.mxu0 0
    %1106 = vmatpush1.bf16.msra.mxu0 0
    %1107 = vmatprep.subr.bf16.mxu0 0
    %1108 = vmatpush1.bf16.msra.mxu0 0
    %1109 = vmatprep.subr.bf16.mxu0 0
    %1110 = vmatpush1.bf16.msra.mxu0 0
    %1111 = vmatprep.subr.bf16.mxu0 0
    %1112 = vmatpush1.bf16.msra.mxu0 0
    %1113 = vmatprep.subr.bf16.mxu0 0
    %1114 = vmatpush1.bf16.msra.mxu0 0
    %1115 = vmatprep.subr.bf16.mxu0 0
    %1116 = vmatpush1.bf16.msra.mxu0 0
    %1117 = vmatprep.subr.bf16.mxu0 0
    %1118 = vmatpush1.bf16.msra.mxu0 0
    %1119 = vmatprep.subr.bf16.mxu0 0
    %1120 = vmatpush1.bf16.msra.mxu0 0
    %1121 = vmatprep.subr.bf16.mxu0 0
    %1122 = vmatpush1.bf16.msra.mxu0 0
    %1123 = vmatprep.subr.bf16.mxu0 0
    %1124 = vmatpush1.bf16.msra.mxu0 0
    %1125 = vmatprep.subr.bf16.mxu0 0
    %1126 = vmatpush1.bf16.msra.mxu0 0
    %1127 = vmatprep.mubr.bf16.mxu0 0
    %1128 = vmatmul.mubr.bf16.gmra.mrb[0].mxu0 %v1093
    %v1129 = vpop.f32.mrb[0].mxu0
    %v1130 = vadd.f32 %v1084, %v1129
    %v1131 = vpop.f32.mrb[0].mxu0
    %v1132 = vpop.f32.mrb[0].mxu0
    %v1133 = vadd.f32 %v1084, %v1132
    %v1134 = vpop.f32.mrb[0].mxu0
    %1135 = vdwg.mxu0
    %1136 = vst [vmem:[#allocation25] sm:$0xff] %v1130
    %1137 = vst [vmem:[#allocation25 + $0x8] sm:$0xff] %v1133
    // Predicated region
    $region114: #{evolvegcn_classifier_forward.1} parent=1 // pred_check
      _
    $region115: #{evolvegcn_classifier_forward.1} parent=1 // pred_check_branch
      %1139 = sbr.rel (0) target = $region117
    $region116: #{evolvegcn_classifier_forward.1} parent=1 // pred_region
      %s1141 = ssub.s32 256, 256
      %1142 = vsyncadd [#allocation4], %s1141
      %s1143 = sshll.u32 [#allocation25], 4
      %s1144 = int_to_ptr.vmem [resolvable:$true] %s1143
      %1149 = dma.vmem_to_hbm [thread:$0]  %s1144, 256, %s14, [#allocation4], 128, 128, 8
    $region117: #{evolvegcn_classifier_forward.1} parent=1 // pred_fallthru
      _
    // Predicated region
    $region118: #{evolvegcn_classifier_forward.1} parent=1 // pred_check
      _
    $region119: #{evolvegcn_classifier_forward.1} parent=1 // pred_check_branch
      %1151 = sbr.rel (0) target = $region121
    $region120: #{evolvegcn_classifier_forward.1} parent=1 // pred_region
      %1152 = dma.done [#allocation4], 256
    $region121: #{evolvegcn_classifier_forward.1} parent=1 // pred_fallthru
      _
    %1153 = vsyncpa [#allocation3], 1
    %1154 = vsyncpa [#allocation6], 1
    %1155 = vsyncpa [#allocation9], 1
    %1156 = vsyncpa [#allocation12], 1
    %1157 = vsyncpa [#allocation15], 1
    %1158 = vsyncpa [#allocation18], 1
    %1159 = vsyncpa [#allocation21], 1
    %1160 = vsyncpa [#allocation24], 1
    %1161 = vsyncpa [#allocation4], 1

</llo_original>
